<compile_context>
chip_gen: v7x
topology: tpu7x:2x2x1
jax: 0.10.0
libtpu: 0.0.40
codegen_flags: <defaults>
</compile_context>

<pallas_src>
import functools

import jax
import jax.numpy as jnp
from jax import lax
from jax.experimental import pallas as pl
from jax.experimental.pallas import tpu as pltpu

EPS = 1e-5

# ky used by output sub-row a for tap offset dy into the 3x3 window of x_pad
# (transposed conv k=4, s=2, p=1):  out[2m+a] = sum_dy x_pad[m+dy] * w[ky].
_KY = {0: {0: 3, 1: 1}, 1: {1: 2, 2: 0}}


def _deconv_bnstats_kernel(p_ref, w_ref, y_ref, sum_ref, sq_ref):
    # p_ref: (TM, 9*Cin)  w_ref: (9*Cin, 4*Cout)  -> y: (TM, 4*Cout) f32
    y = jnp.dot(p_ref[...], w_ref[...], preferred_element_type=jnp.float32)
    y_ref[...] = y
    s = jnp.sum(y, axis=0, keepdims=True)        # (1, 4*Cout) per-tile sum
    q = jnp.sum(y * y, axis=0, keepdims=True)    # (1, 4*Cout) per-tile sum of squares
    # Replicate across the 8 sublanes so the tiny partial output is a clean
    # (8, 4*Cout) tile; the wrapper reads sublane 0.
    sum_ref[...] = jnp.broadcast_to(s, sum_ref.shape)
    sq_ref[...] = jnp.broadcast_to(q, sq_ref.shape)


def _bn_relu_kernel(y_ref, scale_ref, shift_ref, o_ref):
    # Elementwise BN apply + ReLU in f32, channels (tiled) on the lane axis.
    o_ref[...] = jnp.maximum(y_ref[...] * scale_ref[...] + shift_ref[...], 0.0)


def _pick_rows(nrows, bytes_per_row, budget_bytes, max_rows=1024, min_rows=128):
    """Largest power-of-two tile row count within a VMEM byte budget that does
    not grossly over-pad a small problem."""
    t = max_rows
    while t > min_rows and (t * bytes_per_row > budget_bytes or t >= 2 * nrows):
        t //= 2
    return t


def deconv_block_forward(x_nchw, w, gamma, beta, *, compute_dtype=jnp.bfloat16):
    """x_nchw: (N, Cin, H, W); w: (Cin, Cout, 4, 4) (PyTorch ConvTranspose2d layout)."""
    N, Cin, H, W = x_nchw.shape
    Cout = w.shape[1]
    OH, OW = 2 * H, 2 * W
    K = 9 * Cin
    C4 = 4 * Cout
    NHW = N * H * W
    cb = jnp.dtype(compute_dtype).itemsize

    # Group factor so the BN/ReLU kernel's lane width is >= 128 (unmasked vst).
    g = 1
    while g * C4 < 128:
        g *= 2

    # Tile rows for the matmul kernel, sized against a per-step VMEM budget
    # (conservative so it fits double-buffered on v5e/v6e/v7x default scoped VMEM).
    row_bytes = K * cb + C4 * 4
    TM = _pick_rows(NHW, row_bytes, budget_bytes=3 << 20)
    TM = max(TM, 8 * g)                       # keep reshaped BN rows a multiple of 8
    num_tiles = pl.cdiv(NHW, TM)
    NHW_pad = num_tiles * TM

    # 3x3 im2col of the zero-padded input (NHWC, compute dtype).
    # TODO(synk): Option B of the review (pass x_pad via memory_space=pl.ANY and
    # form the 9 taps in-kernel) would cut this remaining 9x HBM expansion to ~1x.
    x_nhwc = jnp.transpose(x_nchw, (0, 2, 3, 1)).astype(compute_dtype)
    xp = jnp.pad(x_nhwc, ((0, 0), (1, 1), (1, 1), (0, 0)))
    taps = [xp[:, dy:dy + H, dx:dx + W, :] for dy in range(3) for dx in range(3)]
    P = jnp.concatenate(taps, axis=-1).reshape(NHW, K)
    if NHW_pad != NHW:
        # Zero rows: their outputs are discarded and they add 0 to the BN sums.
        P = jnp.pad(P, ((0, NHW_pad - NHW), (0, 0)))

    # Block-structured weight (9*Cin, 4*Cout): each (dy,dx) tap row-block holds
    # the matching sub-kernel for each (a,b) output sub-pixel column-block.
    wf = w.astype(jnp.float32)
    zblk = jnp.zeros((Cin, Cout), jnp.float32)
    rows = []
    for dy in range(3):
        for dx in range(3):
            cols = []
            for a in range(2):
                for b in range(2):
                    ky = _KY[a].get(dy)
                    kx = _KY[b].get(dx)
                    cols.append(zblk if (ky is None or kx is None) else wf[:, :, ky, kx])
            rows.append(jnp.concatenate(cols, axis=1))          # (Cin, 4*Cout)
    Wm = jnp.concatenate(rows, axis=0).astype(compute_dtype)     # (9*Cin, 4*Cout)

    # Kernel 1: deconv matmul (all 4 sub-pixels at once) + fused BN partials.
    y, psum, psq = pl.pallas_call(
        _deconv_bnstats_kernel,
        out_shape=(jax.ShapeDtypeStruct((NHW_pad, C4), jnp.float32),
                   jax.ShapeDtypeStruct((num_tiles * 8, C4), jnp.float32),
                   jax.ShapeDtypeStruct((num_tiles * 8, C4), jnp.float32)),
        grid=(num_tiles,),
        in_specs=[pl.BlockSpec((TM, K), lambda i: (i, 0)),
                  pl.BlockSpec((K, C4), lambda i: (0, 0))],
        out_specs=(pl.BlockSpec((TM, C4), lambda i: (i, 0)),
                   pl.BlockSpec((8, C4), lambda i: (i, 0)),
                   pl.BlockSpec((8, C4), lambda i: (i, 0))),
        compiler_params=pltpu.CompilerParams(dimension_semantics=("parallel",)),
    )(P, Wm)

    # Finish BatchNorm statistics on the KB-sized partials (f32, biased var).
    count = jnp.float32(N * OH * OW)
    tot = psum.reshape(num_tiles, 8, C4)[:, 0, :].sum(axis=0).reshape(4, Cout).sum(axis=0)
    tot_sq = psq.reshape(num_tiles, 8, C4)[:, 0, :].sum(axis=0).reshape(4, Cout).sum(axis=0)
    mean = tot / count
    var = tot_sq / count - mean * mean
    scale = gamma.astype(jnp.float32) / jnp.sqrt(var + EPS)
    shift = beta.astype(jnp.float32) - mean * scale

    # Kernel 2: BN + ReLU in the native (rows, 4*Cout) layout, rows folded by g
    # so the lane width g*4*Cout >= 128 (lane-dense stores).
    M2 = NHW_pad // g
    CW = g * C4
    TM2 = TM // g
    while TM2 > 8 and TM2 * CW * 4 > (3 << 20):
        TM2 //= 2
    y2 = y.reshape(M2, CW)
    scale_row = jnp.tile(jnp.tile(scale, 4), g).reshape(1, CW)
    shift_row = jnp.tile(jnp.tile(shift, 4), g).reshape(1, CW)
    out2 = pl.pallas_call(
        _bn_relu_kernel,
        out_shape=jax.ShapeDtypeStruct((M2, CW), jnp.float32),
        grid=(M2 // TM2,),
        in_specs=[pl.BlockSpec((TM2, CW), lambda i: (i, 0)),
                  pl.BlockSpec((1, CW), lambda i: (0, 0)),
                  pl.BlockSpec((1, CW), lambda i: (0, 0))],
        out_specs=pl.BlockSpec((TM2, CW), lambda i: (i, 0)),
        compiler_params=pltpu.CompilerParams(dimension_semantics=("parallel",)),
    )(y2, scale_row, shift_row)

    # Single combined 2x2 sub-pixel interleave + NHWC->NCHW transpose.
    out_flat = out2.reshape(NHW_pad, C4)
    if NHW_pad != NHW:
        out_flat = out_flat[:NHW]
    out = (out_flat.reshape(N, H, W, 2, 2, Cout)
                   .transpose(0, 5, 1, 3, 2, 4)
                   .reshape(N, Cout, OH, OW))
    return out


def reference(x, w, gamma, beta):
    """Pure-JAX reference: lax transposed conv + train-mode BN + ReLU (NCHW, f32)."""
    w_flip = jnp.transpose(jnp.flip(w, axis=(2, 3)), (1, 0, 2, 3))  # (Cout, Cin, 4, 4)
    y = lax.conv_general_dilated(x, w_flip, window_strides=(1, 1),
                                 padding=[(2, 2), (2, 2)], lhs_dilation=(2, 2),
                                 dimension_numbers=('NCHW', 'OIHW', 'NCHW'))
    mean = y.mean(axis=(0, 2, 3), keepdims=True)
    var = y.var(axis=(0, 2, 3), keepdims=True)
    yn = (y - mean) / jnp.sqrt(var + EPS)
    return jnp.maximum(yn * gamma[None, :, None, None] + beta[None, :, None, None], 0.0)


if __name__ == "__main__":
    key = jax.random.PRNGKey(0)
    k1, k2, k3, k4 = jax.random.split(key, 4)

    N, Cin, Cout, H, W = 2, 8, 16, 16, 16
    x = jax.random.normal(k1, (N, Cin, H, W), jnp.float32)
    # nn.ConvTranspose2d weight shape: (in_channels, out_channels, kH, kW)
    w = 0.1 * jax.random.normal(k2, (Cin, Cout, 4, 4), jnp.float32)
    gamma = 1.0 + 0.1 * jax.random.normal(k3, (Cout,), jnp.float32)
    beta = 0.1 * jax.random.normal(k4, (Cout,), jnp.float32)

    ref = reference(x, w, gamma, beta)

    # f32 compute path: tight check against the pure-JAX reference.
    fwd_f32 = jax.jit(functools.partial(deconv_block_forward, compute_dtype=jnp.float32))
    out_f32 = jax.block_until_ready(fwd_f32(x, w, gamma, beta))
    assert out_f32.shape == (N, Cout, 2 * H, 2 * W), out_f32.shape
    err32 = float(jnp.max(jnp.abs(out_f32 - ref)))
    assert jnp.allclose(out_f32, ref, atol=5e-4, rtol=5e-4), f"f32 max |err| = {err32}"

    # bf16 MXU path (default / fast): tolerance relaxed for bf16 input rounding.
    fwd_bf16 = jax.jit(functools.partial(deconv_block_forward, compute_dtype=jnp.bfloat16))
    out_bf16 = jax.block_until_ready(fwd_bf16(x, w, gamma, beta))
    assert out_bf16.shape == (N, Cout, 2 * H, 2 * W), out_bf16.shape
    err16 = float(jnp.max(jnp.abs(out_bf16 - ref)))
    assert jnp.allclose(out_bf16, ref, atol=5e-2, rtol=5e-2), f"bf16 max |err| = {err16}"

    print("KERNEL_OK")
</pallas_src>

<mosaic_0001>
module attributes {stable_mosaic.version = 11 : i64} {
  func.func @_deconv_bnstats_kernel(%arg0: i32, %arg1: memref<512x72xf32, #tpu.memory_space<vmem>>, %arg2: memref<72x64xf32, #tpu.memory_space<vmem>>, %arg3: memref<512x64xf32, #tpu.memory_space<vmem>>, %arg4: memref<8x64xf32, #tpu.memory_space<vmem>>, %arg5: memref<8x64xf32, #tpu.memory_space<vmem>>) attributes {dimension_semantics = [#tpu.dimension_semantics<parallel>], iteration_bounds = array<i64: 1>, scalar_prefetch = 0 : i64, scratch_operands = 0 : i64, tpu.core_type = #tpu.core_type<tc>, window_params = [{transform_indices = @transform_0, window_bounds = array<i64: 512, 72>}, {pipeline_mode = #tpu.pipeline_mode<synchronous>, transform_indices = @transform_1, window_bounds = array<i64: 72, 64>}, {transform_indices = @transform_2, window_bounds = array<i64: 512, 64>}, {transform_indices = @transform_3, window_bounds = array<i64: 8, 64>}, {transform_indices = @transform_4, window_bounds = array<i64: 8, 64>}]} {
    %c0 = arith.constant 0 : index
    %c0_0 = arith.constant 0 : index
    %0 = vector.load %arg1[%c0, %c0_0] : memref<512x72xf32, #tpu.memory_space<vmem>>, vector<512x72xf32>
    %c0_1 = arith.constant 0 : index
    %c0_2 = arith.constant 0 : index
    %1 = vector.load %arg2[%c0_1, %c0_2] : memref<72x64xf32, #tpu.memory_space<vmem>>, vector<72x64xf32>
    %cst = arith.constant dense<0.000000e+00> : vector<512x64xf32>
    %2 = tpu.matmul %0, %1, %cst {dimension_numbers = #tpu.dot_dimension_numbers<[1], [0], [0], [1], [0, 0, 1, 1], [], []>} : vector<512x72xf32>, vector<72x64xf32>, vector<512x64xf32> -> vector<512x64xf32>
    %c0_3 = arith.constant 0 : index
    %c0_4 = arith.constant 0 : index
    %3 = vector.load %arg3[%c0_3, %c0_4] : memref<512x64xf32, #tpu.memory_space<vmem>>, vector<512x64xf32>
    tpu.vector_store %arg3[%c0_3, %c0_4], %2 {strides = array<i32>} : memref<512x64xf32, #tpu.memory_space<vmem>>, vector<512x64xf32>,
    %cst_5 = arith.constant dense<0.000000e+00> : vector<64xf32>
    %4 = vector.multi_reduction <add>, %2, %cst_5 [0] : vector<512x64xf32> to vector<64xf32>
    %5 = vector.shape_cast %4 : vector<64xf32> to vector<1x64xf32>
    %6 = arith.mulf %2, %2 : vector<512x64xf32>
    %cst_6 = arith.constant dense<0.000000e+00> : vector<64xf32>
    %7 = vector.multi_reduction <add>, %6, %cst_6 [0] : vector<512x64xf32> to vector<64xf32>
    %8 = vector.shape_cast %7 : vector<64xf32> to vector<1x64xf32>
    %9 = vector.shape_cast %5 : vector<1x64xf32> to vector<1x64xf32>
    %10 = vector.broadcast %9 : vector<1x64xf32> to vector<8x64xf32>
    %c0_7 = arith.constant 0 : index
    %c0_8 = arith.constant 0 : index
    %11 = vector.load %arg4[%c0_7, %c0_8] : memref<8x64xf32, #tpu.memory_space<vmem>>, vector<8x64xf32>
    tpu.vector_store %arg4[%c0_7, %c0_8], %10 {strides = array<i32>} : memref<8x64xf32, #tpu.memory_space<vmem>>, vector<8x64xf32>,
    %12 = vector.shape_cast %8 : vector<1x64xf32> to vector<1x64xf32>
    %13 = vector.broadcast %12 : vector<1x64xf32> to vector<8x64xf32>
    %c0_9 = arith.constant 0 : index
    %c0_10 = arith.constant 0 : index
    %14 = vector.load %arg5[%c0_9, %c0_10] : memref<8x64xf32, #tpu.memory_space<vmem>>, vector<8x64xf32>
    tpu.vector_store %arg5[%c0_9, %c0_10], %13 {strides = array<i32>} : memref<8x64xf32, #tpu.memory_space<vmem>>, vector<8x64xf32>,
    return
  }
  func.func @transform_0(%arg0: i32) -> (i32, i32) {
    %c0_i32 = arith.constant 0 : i32
    %c0_i32_0 = arith.constant 0 : i32
    return %arg0, %c0_i32 : i32, i32
  }
  func.func @transform_1(%arg0: i32) -> (i32, i32) {
    %c0_i32 = arith.constant 0 : i32
    %c0_i32_0 = arith.constant 0 : i32
    %c0_i32_1 = arith.constant 0 : i32
    return %c0_i32, %c0_i32_0 : i32, i32
  }
  func.func @transform_2(%arg0: i32) -> (i32, i32) {
    %c0_i32 = arith.constant 0 : i32
    %c0_i32_0 = arith.constant 0 : i32
    return %arg0, %c0_i32 : i32, i32
  }
  func.func @transform_3(%arg0: i32) -> (i32, i32) {
    %c0_i32 = arith.constant 0 : i32
    %c0_i32_0 = arith.constant 0 : i32
    return %arg0, %c0_i32 : i32, i32
  }
  func.func @transform_4(%arg0: i32) -> (i32, i32) {
    %c0_i32 = arith.constant 0 : i32
    %c0_i32_0 = arith.constant 0 : i32
    return %arg0, %c0_i32 : i32, i32
  }
}

module attributes {stable_mosaic.version = 11 : i64} {
  func.func @_bn_relu_kernel(%arg0: i32, %arg1: memref<256x128xf32, #tpu.memory_space<vmem>>, %arg2: memref<1x128xf32, #tpu.memory_space<vmem>>, %arg3: memref<1x128xf32, #tpu.memory_space<vmem>>, %arg4: memref<256x128xf32, #tpu.memory_space<vmem>>) attributes {dimension_semantics = [#tpu.dimension_semantics<parallel>], iteration_bounds = array<i64: 1>, scalar_prefetch = 0 : i64, scratch_operands = 0 : i64, tpu.core_type = #tpu.core_type<tc>, window_params = [{transform_indices = @transform_0, window_bounds = array<i64: 256, 128>}, {pipeline_mode = #tpu.pipeline_mode<synchronous>, transform_indices = @transform_1, window_bounds = array<i64: 1, 128>}, {pipeline_mode = #tpu.pipeline_mode<synchronous>, transform_indices = @transform_2, window_bounds = array<i64: 1, 128>}, {transform_indices = @transform_3, window_bounds = array<i64: 256, 128>}]} {
    %c0 = arith.constant 0 : index
    %c0_0 = arith.constant 0 : index
    %0 = vector.load %arg1[%c0, %c0_0] : memref<256x128xf32, #tpu.memory_space<vmem>>, vector<256x128xf32>
    %c0_1 = arith.constant 0 : index
    %c0_2 = arith.constant 0 : index
    %1 = vector.load %arg2[%c0_1, %c0_2] : memref<1x128xf32, #tpu.memory_space<vmem>>, vector<1x128xf32>
    %2 = vector.broadcast %1 : vector<1x128xf32> to vector<256x128xf32>
    %3 = arith.mulf %0, %2 : vector<256x128xf32>
    %c0_3 = arith.constant 0 : index
    %c0_4 = arith.constant 0 : index
    %4 = vector.load %arg3[%c0_3, %c0_4] : memref<1x128xf32, #tpu.memory_space<vmem>>, vector<1x128xf32>
    %5 = vector.broadcast %4 : vector<1x128xf32> to vector<256x128xf32>
    %6 = arith.addf %3, %5 : vector<256x128xf32>
    %cst = arith.constant 0.000000e+00 : f32
    %7 = vector.broadcast %cst : f32 to vector<256x128xf32>
    %8 = arith.maximumf %6, %7 : vector<256x128xf32>
    %c0_5 = arith.constant 0 : index
    %c0_6 = arith.constant 0 : index
    %9 = vector.load %arg4[%c0_5, %c0_6] : memref<256x128xf32, #tpu.memory_space<vmem>>, vector<256x128xf32>
    tpu.vector_store %arg4[%c0_5, %c0_6], %8 {strides = array<i32>} : memref<256x128xf32, #tpu.memory_space<vmem>>, vector<256x128xf32>,
    return
  }
  func.func @transform_0(%arg0: i32) -> (i32, i32) {
    %c0_i32 = arith.constant 0 : i32
    %c0_i32_0 = arith.constant 0 : i32
    return %arg0, %c0_i32 : i32, i32
  }
  func.func @transform_1(%arg0: i32) -> (i32, i32) {
    %c0_i32 = arith.constant 0 : i32
    %c0_i32_0 = arith.constant 0 : i32
    %c0_i32_1 = arith.constant 0 : i32
    return %c0_i32, %c0_i32_0 : i32, i32
  }
  func.func @transform_2(%arg0: i32) -> (i32, i32) {
    %c0_i32 = arith.constant 0 : i32
    %c0_i32_0 = arith.constant 0 : i32
    %c0_i32_1 = arith.constant 0 : i32
    return %c0_i32, %c0_i32_0 : i32, i32
  }
  func.func @transform_3(%arg0: i32) -> (i32, i32) {
    %c0_i32 = arith.constant 0 : i32
    %c0_i32_0 = arith.constant 0 : i32
    return %arg0, %c0_i32 : i32, i32
  }
}

</mosaic_0001>

<llo_original>
// kernel: tile.21
$region0: #{tile.21}
  #allocation0 [shape = 's32[1]{0}', space=sflag, size = 0x4, scoped, tag = 'scoped memory for tile.21']
  %s0 = inlined_call_operand.vmem [shape: f32[16], index: 0, kind: input, shape index: {}]
  %s1 = inlined_call_operand.vmem [shape: f32[4,16], index: 1, kind: output, shape index: {}]
  // Predicated region
  $region2: #{tile.21} parent=0 // pred_check
    _
  $region3: #{tile.21} parent=0 // pred_check_branch
    %3 = sbr.rel (0) target = $region5
  $region4: #{tile.21} parent=0 // pred_region
    _
  $region5: #{tile.21} parent=0 // pred_fallthru
    _
  %v4 = vld [vmem:[%s0] ss:$0 sm:$0xff]
  %5 = vst [vmem:[%s1] sm:$0xf] %v4

// kernel: tile.24
$region0: #{tile.24}
  %s0 = inlined_call_operand.vmem [shape: f32[4,16], index: 0, kind: input, shape index: {}]
  %s1 = inlined_call_operand.vmem [shape: f32[64], index: 1, kind: output, shape index: {}]
  $region1: #{tile.24} parent=0
    #allocation0 [shape = 'u8[4096]{0}', space=vmem, size = 0x1000, scoped, tag = 'scoped mem for output reshape']
    #allocation1 [shape = 'u8[4096]{0}', space=vmem, size = 0x1000, scoped, tag = 'scoped mem for input reshape']
    %s3 = sshllo.u32 0, 4
    %v4 = vld [vmem:[%s0] sm:%s3]
    %5 = vst [vmem:[#allocation1] sm:%s3] %v4
    %v6 = vld [vmem:[#allocation1] sm:$0x1]
    %vm7 = vcmask 130048
    %8 = vst.msk [vmem:[#allocation0] sm:$0x1] %vm7, %v6
    %s9 = scalar_lea.vmem [#allocation1], 3
    %v10 = vld [vmem:[%s9] sm:$0x1]
    %11 = vrot.lane.b32.xlu0 %v10, 48
    %v12 = vpop.permute.xlu0 %11
    %vm13 = vcmask 523648
    %14 = vst.msk [vmem:[#allocation0] sm:$0x1] %vm13, %v12
    %s15 = scalar_lea.vmem [#allocation1], 2
    %v16 = vld [vmem:[%s15] sm:$0x1]
    %17 = vrot.lane.b32.xlu0 %v16, 32
    %v18 = vpop.permute.xlu0 %17
    %vm19 = vcmask 392448
    %20 = vst.msk [vmem:[#allocation0] sm:$0x1] %vm19, %v18
    %s21 = scalar_lea.vmem [#allocation1], 1
    %v22 = vld [vmem:[%s21] sm:$0x1]
    %23 = vrot.lane.b32.xlu0 %v22, 16
    %v24 = vpop.permute.xlu0 %23
    %vm25 = vcmask 261248
    %26 = vst.msk [vmem:[#allocation0] sm:$0x1] %vm25, %v24
    %s28 = sshllo.u32 0, 1
    %v30 = vld [vmem:[#allocation0] sm:%s28]
    %s31 = sshllo.u32 0, 1
    %32 = vst [vmem:[%s1] sm:%s31] %v30

// kernel: tile.25
$region0: #{tile.25}
  #allocation0 [shape = 's32[1]{0}', space=sflag, size = 0x4, scoped, tag = 'scoped memory for tile.25']
  %s0 = inlined_call_operand.vmem [shape: f32[64], index: 0, kind: input, shape index: {}]
  %s1 = inlined_call_operand.vmem [shape: f32[2,64], index: 1, kind: output, shape index: {}]
  // Predicated region
  $region2: #{tile.25} parent=0 // pred_check
    _
  $region3: #{tile.25} parent=0 // pred_check_branch
    %3 = sbr.rel (0) target = $region5
  $region4: #{tile.25} parent=0 // pred_region
    _
  $region5: #{tile.25} parent=0 // pred_fallthru
    _
  %v4 = vld [vmem:[%s0] ss:$0 sm:$0xff]
  %5 = vst [vmem:[%s1] sm:$0x3] %v4

// kernel: tile.26
$region0: #{tile.26}
  %s0 = inlined_call_operand.vmem [shape: f32[2,64], index: 0, kind: input, shape index: {}]
  %s1 = inlined_call_operand.vmem [shape: f32[1,128], index: 1, kind: output, shape index: {}]
  $region1: #{tile.26} parent=0
    #allocation0 [shape = 'u8[4096]{0}', space=vmem, size = 0x1000, scoped, tag = 'scoped mem for output reshape']
    #allocation1 [shape = 'u8[4096]{0}', space=vmem, size = 0x1000, scoped, tag = 'scoped mem for input reshape']
    %s3 = sshllo.u32 0, 2
    %v4 = vld [vmem:[%s0] sm:%s3]
    %5 = vst [vmem:[#allocation1] sm:%s3] %v4
    %v6 = vld [vmem:[#allocation1] sm:$0x1]
    %vm7 = vcmask 523264
    %8 = vst.msk [vmem:[#allocation0] sm:$0x1] %vm7, %v6
    %s9 = scalar_lea.vmem [#allocation1], 1
    %v10 = vld [vmem:[%s9] sm:$0x1]
    %11 = vrot.lane.b32.xlu0 %v10, 64
    %v12 = vpop.permute.xlu0 %11
    %vm13 = vcmask 1048064
    %14 = vst.msk [vmem:[#allocation0] sm:$0x1] %vm13, %v12
    %s16 = sshllo.u32 0, 1
    %v18 = vld [vmem:[#allocation0] sm:%s16]
    %s19 = sshllo.u32 0, 1
    %20 = vst [vmem:[%s1] sm:%s19] %v18

// kernel: deconv_block_forward.3
$region0: #{deconv_block_forward.3}
  #allocation0 [shape = 'u32[]', space=smem, size = 0x4, offset = 0x4, fixed_abs, tag = 'smem constant byte address 0x4 - core index']
  #allocation1 [shape = 'u32[144,128]{1,0:T(1,128)}', space=vmem, size = 0x12000, scoped, tag = 'internal scratch']
  %s0 = inlined_call_operand.vmem [shape: f32[256,128], index: 0, kind: input, shape index: {}]
  %s1 = inlined_call_operand.vmem [shape: f32[1,128], index: 1, kind: input, shape index: {}]
  %s2 = inlined_call_operand.vmem [shape: f32[1,128], index: 2, kind: input, shape index: {}]
  %s3 = inlined_call_operand.vmem [shape: f32[256,128], index: 3, kind: output, shape index: {}]
  %s4 = sld [smem:[#allocation0]]
  $region22: #{deconv_block_forward.3} parent=0
    _
  %s6 = ssub.s32 1, %s4
  %s7 = scalar_select 0, %s6, %s4
  // Predicated region
  $region2: #{deconv_block_forward.3} parent=0 // pred_check
    _
  $region3: #{deconv_block_forward.3} parent=0 // pred_check_branch
    %9 = sbr.rel (0) target = $region5
  $region4: #{deconv_block_forward.3} parent=0 // pred_region
    _
  $region5: #{deconv_block_forward.3} parent=0 // pred_fallthru
    _
  // Predicated region
  $region6: #{deconv_block_forward.3} parent=0 // pred_check
    _
  $region7: #{deconv_block_forward.3} parent=0 // pred_check_branch
    %11 = sbr.rel (0) target = $region9
  $region8: #{deconv_block_forward.3} parent=0 // pred_region
    _
  $region9: #{deconv_block_forward.3} parent=0 // pred_fallthru
    _
  // Predicated region
  $region10: #{deconv_block_forward.3} parent=0 // pred_check
    _
  $region11: #{deconv_block_forward.3} parent=0 // pred_check_branch
    %13 = sbr.rel (0) target = $region13
  $region12: #{deconv_block_forward.3} parent=0 // pred_region
    _
  $region13: #{deconv_block_forward.3} parent=0 // pred_fallthru
    _
  %v14 = vld [vmem:[%s0] sm:$0xff]
  %v15 = vld [vmem:[%s0 + $0x8] sm:$0xff]
  %v16 = vld [vmem:[%s0 + $0x10] sm:$0xff]
  %v17 = vld [vmem:[%s0 + $0x18] sm:$0xff]
  %v18 = vld [vmem:[%s0 + $0x20] sm:$0xff]
  %v19 = vld [vmem:[%s0 + $0x28] sm:$0xff]
  %v20 = vld [vmem:[%s0 + $0x30] sm:$0xff]
  %v21 = vld [vmem:[%s0 + $0x38] sm:$0xff]
  %v22 = vld [vmem:[%s0 + $0x40] sm:$0xff]
  %v23 = vld [vmem:[%s0 + $0x48] sm:$0xff]
  %v24 = vld [vmem:[%s0 + $0x50] sm:$0xff]
  %v25 = vld [vmem:[%s0 + $0x58] sm:$0xff]
  %v26 = vld [vmem:[%s0 + $0x60] sm:$0xff]
  %v27 = vld [vmem:[%s0 + $0x68] sm:$0xff]
  %v28 = vld [vmem:[%s0 + $0x70] sm:$0xff]
  %v29 = vld [vmem:[%s0 + $0x78] sm:$0xff]
  %v30 = vld [vmem:[%s0 + $0x80] sm:$0xff]
  %v31 = vld [vmem:[%s0 + $0x88] sm:$0xff]
  %v32 = vld [vmem:[%s0 + $0x90] sm:$0xff]
  %v33 = vld [vmem:[%s0 + $0x98] sm:$0xff]
  %v34 = vld [vmem:[%s0 + $0xa0] sm:$0xff]
  %v35 = vld [vmem:[%s0 + $0xa8] sm:$0xff]
  %v36 = vld [vmem:[%s0 + $0xb0] sm:$0xff]
  %v37 = vld [vmem:[%s0 + $0xb8] sm:$0xff]
  %v38 = vld [vmem:[%s0 + $0xc0] sm:$0xff]
  %v39 = vld [vmem:[%s0 + $0xc8] sm:$0xff]
  %v40 = vld [vmem:[%s0 + $0xd0] sm:$0xff]
  %v41 = vld [vmem:[%s0 + $0xd8] sm:$0xff]
  %v42 = vld [vmem:[%s0 + $0xe0] sm:$0xff]
  %v43 = vld [vmem:[%s0 + $0xe8] sm:$0xff]
  %v44 = vld [vmem:[%s0 + $0xf0] sm:$0xff]
  %v45 = vld [vmem:[%s0 + $0xf8] sm:$0xff]
  %v46 = vld [vmem:[%s1] sm:$0x1]
  %v48 = vlaneseq
  %v49 = vshrl.u32 %v48, 7
  %v50 = vsub.s32 0, %v49
  %v51 = vrot.slane %v46, %v50
  %v53 = vmul.f32 %v14, %v51
  %v54 = vmul.f32 %v15, %v51
  %v55 = vmul.f32 %v16, %v51
  %v56 = vmul.f32 %v17, %v51
  %v57 = vmul.f32 %v18, %v51
  %v58 = vmul.f32 %v19, %v51
  %v59 = vmul.f32 %v20, %v51
  %v60 = vmul.f32 %v21, %v51
  %v61 = vmul.f32 %v22, %v51
  %v62 = vmul.f32 %v23, %v51
  %v63 = vmul.f32 %v24, %v51
  %v64 = vmul.f32 %v25, %v51
  %v65 = vmul.f32 %v26, %v51
  %v66 = vmul.f32 %v27, %v51
  %v67 = vmul.f32 %v28, %v51
  %v68 = vmul.f32 %v29, %v51
  %v69 = vmul.f32 %v30, %v51
  %v70 = vmul.f32 %v31, %v51
  %v71 = vmul.f32 %v32, %v51
  %v72 = vmul.f32 %v33, %v51
  %v73 = vmul.f32 %v34, %v51
  %v74 = vmul.f32 %v35, %v51
  %v75 = vmul.f32 %v36, %v51
  %v76 = vmul.f32 %v37, %v51
  %v77 = vmul.f32 %v38, %v51
  %v78 = vmul.f32 %v39, %v51
  %v79 = vmul.f32 %v40, %v51
  %v80 = vmul.f32 %v41, %v51
  %v81 = vmul.f32 %v42, %v51
  %v82 = vmul.f32 %v43, %v51
  %v83 = vmul.f32 %v44, %v51
  %v84 = vmul.f32 %v45, %v51
  %v85 = vld [vmem:[%s2] sm:$0x1]
  %v87 = vlaneseq
  %v88 = vshrl.u32 %v87, 7
  %v89 = vsub.s32 0, %v88
  %v90 = vrot.slane %v85, %v89
  %v92 = vadd.f32 %v53, %v90
  %v93 = vadd.f32 %v54, %v90
  %v94 = vadd.f32 %v55, %v90
  %v95 = vadd.f32 %v56, %v90
  %v96 = vadd.f32 %v57, %v90
  %v97 = vadd.f32 %v58, %v90
  %v98 = vadd.f32 %v59, %v90
  %v99 = vadd.f32 %v60, %v90
  %v100 = vadd.f32 %v61, %v90
  %v101 = vadd.f32 %v62, %v90
  %v102 = vadd.f32 %v63, %v90
  %v103 = vadd.f32 %v64, %v90
  %v104 = vadd.f32 %v65, %v90
  %v105 = vadd.f32 %v66, %v90
  %v106 = vadd.f32 %v67, %v90
  %v107 = vadd.f32 %v68, %v90
  %v108 = vadd.f32 %v69, %v90
  %v109 = vadd.f32 %v70, %v90
  %v110 = vadd.f32 %v71, %v90
  %v111 = vadd.f32 %v72, %v90
  %v112 = vadd.f32 %v73, %v90
  %v113 = vadd.f32 %v74, %v90
  %v114 = vadd.f32 %v75, %v90
  %v115 = vadd.f32 %v76, %v90
  %v116 = vadd.f32 %v77, %v90
  %v117 = vadd.f32 %v78, %v90
  %v118 = vadd.f32 %v79, %v90
  %v119 = vadd.f32 %v80, %v90
  %v120 = vadd.f32 %v81, %v90
  %v121 = vadd.f32 %v82, %v90
  %v122 = vadd.f32 %v83, %v90
  %v123 = vadd.f32 %v84, %v90
  %v124 = vmax.f32 %v92, 0.0
  %v125 = vmax.f32 %v93, 0.0
  %v126 = vmax.f32 %v94, 0.0
  %v127 = vmax.f32 %v95, 0.0
  %v128 = vmax.f32 %v96, 0.0
  %v129 = vmax.f32 %v97, 0.0
  %v130 = vmax.f32 %v98, 0.0
  %v131 = vmax.f32 %v99, 0.0
  %v132 = vmax.f32 %v100, 0.0
  %v133 = vmax.f32 %v101, 0.0
  %v134 = vmax.f32 %v102, 0.0
  %v135 = vmax.f32 %v103, 0.0
  %v136 = vmax.f32 %v104, 0.0
  %v137 = vmax.f32 %v105, 0.0
  %v138 = vmax.f32 %v106, 0.0
  %v139 = vmax.f32 %v107, 0.0
  %v140 = vmax.f32 %v108, 0.0
  %v141 = vmax.f32 %v109, 0.0
  %v142 = vmax.f32 %v110, 0.0
  %v143 = vmax.f32 %v111, 0.0
  %v144 = vmax.f32 %v112, 0.0
  %v145 = vmax.f32 %v113, 0.0
  %v146 = vmax.f32 %v114, 0.0
  %v147 = vmax.f32 %v115, 0.0
  %v148 = vmax.f32 %v116, 0.0
  %v149 = vmax.f32 %v117, 0.0
  %v150 = vmax.f32 %v118, 0.0
  %v151 = vmax.f32 %v119, 0.0
  %v152 = vmax.f32 %v120, 0.0
  %v153 = vmax.f32 %v121, 0.0
  %v154 = vmax.f32 %v122, 0.0
  %v155 = vmax.f32 %v123, 0.0
  %156 = vst [vmem:[%s3] sm:$0xff] %v124
  %157 = vst [vmem:[%s3 + $0x8] sm:$0xff] %v125
  %158 = vst [vmem:[%s3 + $0x10] sm:$0xff] %v126
  %159 = vst [vmem:[%s3 + $0x18] sm:$0xff] %v127
  %160 = vst [vmem:[%s3 + $0x20] sm:$0xff] %v128
  %161 = vst [vmem:[%s3 + $0x28] sm:$0xff] %v129
  %162 = vst [vmem:[%s3 + $0x30] sm:$0xff] %v130
  %163 = vst [vmem:[%s3 + $0x38] sm:$0xff] %v131
  %164 = vst [vmem:[%s3 + $0x40] sm:$0xff] %v132
  %165 = vst [vmem:[%s3 + $0x48] sm:$0xff] %v133
  %166 = vst [vmem:[%s3 + $0x50] sm:$0xff] %v134
  %167 = vst [vmem:[%s3 + $0x58] sm:$0xff] %v135
  %168 = vst [vmem:[%s3 + $0x60] sm:$0xff] %v136
  %169 = vst [vmem:[%s3 + $0x68] sm:$0xff] %v137
  %170 = vst [vmem:[%s3 + $0x70] sm:$0xff] %v138
  %171 = vst [vmem:[%s3 + $0x78] sm:$0xff] %v139
  %172 = vst [vmem:[%s3 + $0x80] sm:$0xff] %v140
  %173 = vst [vmem:[%s3 + $0x88] sm:$0xff] %v141
  %174 = vst [vmem:[%s3 + $0x90] sm:$0xff] %v142
  %175 = vst [vmem:[%s3 + $0x98] sm:$0xff] %v143
  %176 = vst [vmem:[%s3 + $0xa0] sm:$0xff] %v144
  %177 = vst [vmem:[%s3 + $0xa8] sm:$0xff] %v145
  %178 = vst [vmem:[%s3 + $0xb0] sm:$0xff] %v146
  %179 = vst [vmem:[%s3 + $0xb8] sm:$0xff] %v147
  %180 = vst [vmem:[%s3 + $0xc0] sm:$0xff] %v148
  %181 = vst [vmem:[%s3 + $0xc8] sm:$0xff] %v149
  %182 = vst [vmem:[%s3 + $0xd0] sm:$0xff] %v150
  %183 = vst [vmem:[%s3 + $0xd8] sm:$0xff] %v151
  %184 = vst [vmem:[%s3 + $0xe0] sm:$0xff] %v152
  %185 = vst [vmem:[%s3 + $0xe8] sm:$0xff] %v153
  %186 = vst [vmem:[%s3 + $0xf0] sm:$0xff] %v154
  %187 = vst [vmem:[%s3 + $0xf8] sm:$0xff] %v155
  // Predicated region
  $region14: #{deconv_block_forward.3} parent=0 // pred_check
    _
  $region15: #{deconv_block_forward.3} parent=0 // pred_check_branch
    %189 = sbr.rel (0) target = $region17
  $region16: #{deconv_block_forward.3} parent=0 // pred_region
    _
  $region17: #{deconv_block_forward.3} parent=0 // pred_fallthru
    _
  // Predicated region
  $region18: #{deconv_block_forward.3} parent=0 // pred_check
    _
  $region19: #{deconv_block_forward.3} parent=0 // pred_check_branch
    %191 = sbr.rel (0) target = $region21
  $region20: #{deconv_block_forward.3} parent=0 // pred_region
    _
  $region21: #{deconv_block_forward.3} parent=0 // pred_fallthru
    _

// kernel: deconv_block_forward.2
$region0: #{deconv_block_forward.2}
  #allocation0 [shape = 'u32[]', space=smem, size = 0x4, offset = 0x4, fixed_abs, tag = 'smem constant byte address 0x4 - core index']
  #allocation1 [shape = 'u32[144,128]{1,0:T(1,128)}', space=vmem, size = 0x12000, scoped, tag = 'internal scratch']
  %s0 = inlined_call_operand.vmem [shape: f32[512,72], index: 0, kind: input, shape index: {}]
  %s1 = inlined_call_operand.vmem [shape: f32[72,64], index: 1, kind: input, shape index: {}]
  %s2 = inlined_call_operand.vmem [shape: f32[512,64], index: 2, kind: output, shape index: {0}]
  %s3 = inlined_call_operand.vmem [shape: f32[8,64], index: 3, kind: output, shape index: {1}]
  %s4 = inlined_call_operand.vmem [shape: f32[8,64], index: 4, kind: output, shape index: {2}]
  %5 = xla_tuple %s2, %s3, %s4
  %s6 = sld [smem:[#allocation0]]
  $region34: #{deconv_block_forward.2} parent=0
    _
  %s8 = ssub.s32 1, %s6
  %s9 = scalar_select 0, %s8, %s6
  // Predicated region
  $region2: #{deconv_block_forward.2} parent=0 // pred_check
    _
  $region3: #{deconv_block_forward.2} parent=0 // pred_check_branch
    %11 = sbr.rel (0) target = $region5
  $region4: #{deconv_block_forward.2} parent=0 // pred_region
    _
  $region5: #{deconv_block_forward.2} parent=0 // pred_fallthru
    _
  // Predicated region
  $region6: #{deconv_block_forward.2} parent=0 // pred_check
    _
  $region7: #{deconv_block_forward.2} parent=0 // pred_check_branch
    %13 = sbr.rel (0) target = $region9
  $region8: #{deconv_block_forward.2} parent=0 // pred_region
    _
  $region9: #{deconv_block_forward.2} parent=0 // pred_fallthru
    _
  %v14 = vld [vmem:[%s0] sm:$0xff]
  %v15 = vld [vmem:[%s0 + $0x8] sm:$0xff]
  %v16 = vld [vmem:[%s0 + $0x10] sm:$0xff]
  %v17 = vld [vmem:[%s0 + $0x18] sm:$0xff]
  %v18 = vld [vmem:[%s0 + $0x20] sm:$0xff]
  %v19 = vld [vmem:[%s0 + $0x28] sm:$0xff]
  %v20 = vld [vmem:[%s0 + $0x30] sm:$0xff]
  %v21 = vld [vmem:[%s0 + $0x38] sm:$0xff]
  %v22 = vld [vmem:[%s0 + $0x40] sm:$0xff]
  %v23 = vld [vmem:[%s0 + $0x48] sm:$0xff]
  %v24 = vld [vmem:[%s0 + $0x50] sm:$0xff]
  %v25 = vld [vmem:[%s0 + $0x58] sm:$0xff]
  %v26 = vld [vmem:[%s0 + $0x60] sm:$0xff]
  %v27 = vld [vmem:[%s0 + $0x68] sm:$0xff]
  %v28 = vld [vmem:[%s0 + $0x70] sm:$0xff]
  %v29 = vld [vmem:[%s0 + $0x78] sm:$0xff]
  %v30 = vld [vmem:[%s0 + $0x80] sm:$0xff]
  %v31 = vld [vmem:[%s0 + $0x88] sm:$0xff]
  %v32 = vld [vmem:[%s0 + $0x90] sm:$0xff]
  %v33 = vld [vmem:[%s0 + $0x98] sm:$0xff]
  %v34 = vld [vmem:[%s0 + $0xa0] sm:$0xff]
  %v35 = vld [vmem:[%s0 + $0xa8] sm:$0xff]
  %v36 = vld [vmem:[%s0 + $0xb0] sm:$0xff]
  %v37 = vld [vmem:[%s0 + $0xb8] sm:$0xff]
  %v38 = vld [vmem:[%s0 + $0xc0] sm:$0xff]
  %v39 = vld [vmem:[%s0 + $0xc8] sm:$0xff]
  %v40 = vld [vmem:[%s0 + $0xd0] sm:$0xff]
  %v41 = vld [vmem:[%s0 + $0xd8] sm:$0xff]
  %v42 = vld [vmem:[%s0 + $0xe0] sm:$0xff]
  %v43 = vld [vmem:[%s0 + $0xe8] sm:$0xff]
  %v44 = vld [vmem:[%s0 + $0xf0] sm:$0xff]
  %v45 = vld [vmem:[%s0 + $0xf8] sm:$0xff]
  %v46 = vld [vmem:[%s0 + $0x100] sm:$0xff]
  %v47 = vld [vmem:[%s0 + $0x108] sm:$0xff]
  %v48 = vld [vmem:[%s0 + $0x110] sm:$0xff]
  %v49 = vld [vmem:[%s0 + $0x118] sm:$0xff]
  %v50 = vld [vmem:[%s0 + $0x120] sm:$0xff]
  %v51 = vld [vmem:[%s0 + $0x128] sm:$0xff]
  %v52 = vld [vmem:[%s0 + $0x130] sm:$0xff]
  %v53 = vld [vmem:[%s0 + $0x138] sm:$0xff]
  %v54 = vld [vmem:[%s0 + $0x140] sm:$0xff]
  %v55 = vld [vmem:[%s0 + $0x148] sm:$0xff]
  %v56 = vld [vmem:[%s0 + $0x150] sm:$0xff]
  %v57 = vld [vmem:[%s0 + $0x158] sm:$0xff]
  %v58 = vld [vmem:[%s0 + $0x160] sm:$0xff]
  %v59 = vld [vmem:[%s0 + $0x168] sm:$0xff]
  %v60 = vld [vmem:[%s0 + $0x170] sm:$0xff]
  %v61 = vld [vmem:[%s0 + $0x178] sm:$0xff]
  %v62 = vld [vmem:[%s0 + $0x180] sm:$0xff]
  %v63 = vld [vmem:[%s0 + $0x188] sm:$0xff]
  %v64 = vld [vmem:[%s0 + $0x190] sm:$0xff]
  %v65 = vld [vmem:[%s0 + $0x198] sm:$0xff]
  %v66 = vld [vmem:[%s0 + $0x1a0] sm:$0xff]
  %v67 = vld [vmem:[%s0 + $0x1a8] sm:$0xff]
  %v68 = vld [vmem:[%s0 + $0x1b0] sm:$0xff]
  %v69 = vld [vmem:[%s0 + $0x1b8] sm:$0xff]
  %v70 = vld [vmem:[%s0 + $0x1c0] sm:$0xff]
  %v71 = vld [vmem:[%s0 + $0x1c8] sm:$0xff]
  %v72 = vld [vmem:[%s0 + $0x1d0] sm:$0xff]
  %v73 = vld [vmem:[%s0 + $0x1d8] sm:$0xff]
  %v74 = vld [vmem:[%s0 + $0x1e0] sm:$0xff]
  %v75 = vld [vmem:[%s0 + $0x1e8] sm:$0xff]
  %v76 = vld [vmem:[%s0 + $0x1f0] sm:$0xff]
  %v77 = vld [vmem:[%s0 + $0x1f8] sm:$0xff]
  %v78 = vld [vmem:[%s1] sm:$0xff]
  %v79 = vld [vmem:[%s1 + $0x8] sm:$0xff]
  %v80 = vld [vmem:[%s1 + $0x10] sm:$0xff]
  %v81 = vld [vmem:[%s1 + $0x18] sm:$0xff]
  %v82 = vld [vmem:[%s1 + $0x20] sm:$0xff]
  %v83 = vld [vmem:[%s1 + $0x28] sm:$0xff]
  %v84 = vld [vmem:[%s1 + $0x30] sm:$0xff]
  %v85 = vld [vmem:[%s1 + $0x38] sm:$0xff]
  %v86 = vld [vmem:[%s1 + $0x40] sm:$0xff]
  %vm87 = vcmask 588800
  %v89 = vsel %vm87, %v14, 0
  %v92 = vsel %vm87, %v15, 0
  %v95 = vsel %vm87, %v16, 0
  %v98 = vsel %vm87, %v17, 0
  %v101 = vsel %vm87, %v18, 0
  %v104 = vsel %vm87, %v19, 0
  %v107 = vsel %vm87, %v20, 0
  %v110 = vsel %vm87, %v21, 0
  %v113 = vsel %vm87, %v22, 0
  %v116 = vsel %vm87, %v23, 0
  %v119 = vsel %vm87, %v24, 0
  %v122 = vsel %vm87, %v25, 0
  %v125 = vsel %vm87, %v26, 0
  %v128 = vsel %vm87, %v27, 0
  %v131 = vsel %vm87, %v28, 0
  %v134 = vsel %vm87, %v29, 0
  %v137 = vsel %vm87, %v30, 0
  %v140 = vsel %vm87, %v31, 0
  %v143 = vsel %vm87, %v32, 0
  %v146 = vsel %vm87, %v33, 0
  %v149 = vsel %vm87, %v34, 0
  %v152 = vsel %vm87, %v35, 0
  %v155 = vsel %vm87, %v36, 0
  %v158 = vsel %vm87, %v37, 0
  %v161 = vsel %vm87, %v38, 0
  %v164 = vsel %vm87, %v39, 0
  %v167 = vsel %vm87, %v40, 0
  %v170 = vsel %vm87, %v41, 0
  %v173 = vsel %vm87, %v42, 0
  %v176 = vsel %vm87, %v43, 0
  %v179 = vsel %vm87, %v44, 0
  %v182 = vsel %vm87, %v45, 0
  %v185 = vsel %vm87, %v46, 0
  %v188 = vsel %vm87, %v47, 0
  %v191 = vsel %vm87, %v48, 0
  %v194 = vsel %vm87, %v49, 0
  %v197 = vsel %vm87, %v50, 0
  %v200 = vsel %vm87, %v51, 0
  %v203 = vsel %vm87, %v52, 0
  %v206 = vsel %vm87, %v53, 0
  %v209 = vsel %vm87, %v54, 0
  %v212 = vsel %vm87, %v55, 0
  %v215 = vsel %vm87, %v56, 0
  %v218 = vsel %vm87, %v57, 0
  %v221 = vsel %vm87, %v58, 0
  %v224 = vsel %vm87, %v59, 0
  %v227 = vsel %vm87, %v60, 0
  %v230 = vsel %vm87, %v61, 0
  %v233 = vsel %vm87, %v62, 0
  %v236 = vsel %vm87, %v63, 0
  %v239 = vsel %vm87, %v64, 0
  %v242 = vsel %vm87, %v65, 0
  %v245 = vsel %vm87, %v66, 0
  %v248 = vsel %vm87, %v67, 0
  %v251 = vsel %vm87, %v68, 0
  %v254 = vsel %vm87, %v69, 0
  %v257 = vsel %vm87, %v70, 0
  %v260 = vsel %vm87, %v71, 0
  %v263 = vsel %vm87, %v72, 0
  %v266 = vsel %vm87, %v73, 0
  %v269 = vsel %vm87, %v74, 0
  %v272 = vsel %vm87, %v75, 0
  %v275 = vsel %vm87, %v76, 0
  %v278 = vsel %vm87, %v77, 0
  %280 = vmatprep.subr.mxu0 0.0
  %281 = vmatpush1.msra.mxu0 %v78
  %282 = vmatprep.subr.mxu0 0.0
  %283 = vmatpush1.msra.mxu0 %v79
  %284 = vmatprep.subr.mxu0 0.0
  %285 = vmatpush1.msra.mxu0 %v80
  %286 = vmatprep.subr.mxu0 0.0
  %287 = vmatpush1.msra.mxu0 %v81
  %288 = vmatprep.subr.mxu0 0.0
  %289 = vmatpush1.msra.mxu0 %v82
  %290 = vmatprep.subr.mxu0 0.0
  %291 = vmatpush1.msra.mxu0 %v83
  %292 = vmatprep.subr.mxu0 0.0
  %293 = vmatpush1.msra.mxu0 %v84
  %294 = vmatprep.subr.mxu0 0.0
  %295 = vmatpush1.msra.mxu0 %v85
  %296 = vmatprep.subr.mxu0 0.0
  %297 = vmatpush1.msra.mxu0 %v86
  %298 = vmatprep.subr.mxu0 0.0
  %299 = vmatpush1.msra.mxu0 0.0
  %300 = vmatprep.subr.mxu0 0.0
  %301 = vmatpush1.msra.mxu0 0.0
  %302 = vmatprep.subr.mxu0 0.0
  %303 = vmatpush1.msra.mxu0 0.0
  %304 = vmatprep.subr.mxu0 0.0
  %305 = vmatpush1.msra.mxu0 0.0
  %306 = vmatprep.subr.mxu0 0.0
  %307 = vmatpush1.msra.mxu0 0.0
  %308 = vmatprep.subr.mxu0 0.0
  %309 = vmatpush1.msra.mxu0 0.0
  %310 = vmatprep.subr.mxu0 0.0
  %311 = vmatpush1.msra.mxu0 0.0
  %312 = vmatprep.subr.mxu0 0.0
  %313 = vmatpush1.msra.mxu0 0.0
  %314 = vmatprep.subr.mxu0 0.0
  %315 = vmatpush1.msra.mxu0 0.0
  %316 = vmatprep.subr.mxu0 0.0
  %317 = vmatpush1.msra.mxu0 0.0
  %318 = vmatprep.subr.mxu0 0.0
  %319 = vmatpush1.msra.mxu0 0.0
  %320 = vmatprep.subr.mxu0 0.0
  %321 = vmatpush1.msra.mxu0 0.0
  %322 = vmatprep.subr.mxu0 0.0
  %323 = vmatpush1.msra.mxu0 0.0
  %324 = vmatprep.subr.mxu0 0.0
  %325 = vmatpush1.msra.mxu0 0.0
  %326 = vmatprep.subr.mxu0 0.0
  %327 = vmatpush1.msra.mxu0 0.0
  %328 = vmatprep.subr.mxu0 0.0
  %329 = vmatpush1.msra.mxu0 0.0
  %330 = vmatprep.subr.mxu0 0.0
  %331 = vmatpush1.msra.mxu0 0.0
  %332 = vmatprep.subr.mxu0 0.0
  %333 = vmatpush1.msra.mxu0 0.0
  %334 = vmatprep.subr.mxu0 0.0
  %335 = vmatpush1.msra.mxu0 0.0
  %336 = vmatprep.subr.mxu0 0.0
  %337 = vmatpush1.msra.mxu0 0.0
  %338 = vmatprep.subr.mxu0 0.0
  %339 = vmatpush1.msra.mxu0 0.0
  %340 = vmatprep.subr.mxu0 0.0
  %341 = vmatpush1.msra.mxu0 0.0
  %342 = vmatprep.subr.mxu0 0.0
  %343 = vmatpush1.msra.mxu0 0.0
  %344 = vmatprep.mubr.f32.mxu0 0.0
  %345 = vmatmul.mubr.f32.gmra.mrb[0].mxu0 %v89
  %v346 = vpop.f32.mrb[0].mxu0
  %v347 = vadd.f32 0.0, %v346
  %v348 = vpop.f32.mrb[0].mxu0
  %349 = vmatprep.mubr.f32.mxu0 0.0
  %350 = vmatmul.mubr.f32.gmra.mrb[0].mxu0 %v92
  %v351 = vpop.f32.mrb[0].mxu0
  %v352 = vadd.f32 0.0, %v351
  %v353 = vpop.f32.mrb[0].mxu0
  %354 = vmatprep.mubr.f32.mxu0 0.0
  %355 = vmatmul.mubr.f32.gmra.mrb[0].mxu0 %v95
  %v356 = vpop.f32.mrb[0].mxu0
  %v357 = vadd.f32 0.0, %v356
  %v358 = vpop.f32.mrb[0].mxu0
  %359 = vmatprep.mubr.f32.mxu0 0.0
  %360 = vmatmul.mubr.f32.gmra.mrb[0].mxu0 %v98
  %v361 = vpop.f32.mrb[0].mxu0
  %v362 = vadd.f32 0.0, %v361
  %v363 = vpop.f32.mrb[0].mxu0
  %364 = vmatprep.mubr.f32.mxu0 0.0
  %365 = vmatmul.mubr.f32.gmra.mrb[0].mxu0 %v101
  %v366 = vpop.f32.mrb[0].mxu0
  %v367 = vadd.f32 0.0, %v366
  %v368 = vpop.f32.mrb[0].mxu0
  %369 = vmatprep.mubr.f32.mxu0 0.0
  %370 = vmatmul.mubr.f32.gmra.mrb[0].mxu0 %v104
  %v371 = vpop.f32.mrb[0].mxu0
  %v372 = vadd.f32 0.0, %v371
  %v373 = vpop.f32.mrb[0].mxu0
  %374 = vmatprep.mubr.f32.mxu0 0.0
  %375 = vmatmul.mubr.f32.gmra.mrb[0].mxu0 %v107
  %v376 = vpop.f32.mrb[0].mxu0
  %v377 = vadd.f32 0.0, %v376
  %v378 = vpop.f32.mrb[0].mxu0
  %379 = vmatprep.mubr.f32.mxu0 0.0
  %380 = vmatmul.mubr.f32.gmra.mrb[0].mxu0 %v110
  %v381 = vpop.f32.mrb[0].mxu0
  %v382 = vadd.f32 0.0, %v381
  %v383 = vpop.f32.mrb[0].mxu0
  %384 = vmatprep.mubr.f32.mxu0 0.0
  %385 = vmatmul.mubr.f32.gmra.mrb[0].mxu0 %v113
  %v386 = vpop.f32.mrb[0].mxu0
  %v387 = vadd.f32 0.0, %v386
  %v388 = vpop.f32.mrb[0].mxu0
  %389 = vmatprep.mubr.f32.mxu0 0.0
  %390 = vmatmul.mubr.f32.gmra.mrb[0].mxu0 %v116
  %v391 = vpop.f32.mrb[0].mxu0
  %v392 = vadd.f32 0.0, %v391
  %v393 = vpop.f32.mrb[0].mxu0
  %394 = vmatprep.mubr.f32.mxu0 0.0
  %395 = vmatmul.mubr.f32.gmra.mrb[0].mxu0 %v119
  %v396 = vpop.f32.mrb[0].mxu0
  %v397 = vadd.f32 0.0, %v396
  %v398 = vpop.f32.mrb[0].mxu0
  %399 = vmatprep.mubr.f32.mxu0 0.0
  %400 = vmatmul.mubr.f32.gmra.mrb[0].mxu0 %v122
  %v401 = vpop.f32.mrb[0].mxu0
  %v402 = vadd.f32 0.0, %v401
  %v403 = vpop.f32.mrb[0].mxu0
  %404 = vmatprep.mubr.f32.mxu0 0.0
  %405 = vmatmul.mubr.f32.gmra.mrb[0].mxu0 %v125
  %v406 = vpop.f32.mrb[0].mxu0
  %v407 = vadd.f32 0.0, %v406
  %v408 = vpop.f32.mrb[0].mxu0
  %409 = vmatprep.mubr.f32.mxu0 0.0
  %410 = vmatmul.mubr.f32.gmra.mrb[0].mxu0 %v128
  %v411 = vpop.f32.mrb[0].mxu0
  %v412 = vadd.f32 0.0, %v411
  %v413 = vpop.f32.mrb[0].mxu0
  %414 = vmatprep.mubr.f32.mxu0 0.0
  %415 = vmatmul.mubr.f32.gmra.mrb[0].mxu0 %v131
  %v416 = vpop.f32.mrb[0].mxu0
  %v417 = vadd.f32 0.0, %v416
  %v418 = vpop.f32.mrb[0].mxu0
  %419 = vmatprep.mubr.f32.mxu0 0.0
  %420 = vmatmul.mubr.f32.gmra.mrb[0].mxu0 %v134
  %v421 = vpop.f32.mrb[0].mxu0
  %v422 = vadd.f32 0.0, %v421
  %v423 = vpop.f32.mrb[0].mxu0
  %424 = vmatprep.mubr.f32.mxu0 0.0
  %425 = vmatmul.mubr.f32.gmra.mrb[0].mxu0 %v137
  %v426 = vpop.f32.mrb[0].mxu0
  %v427 = vadd.f32 0.0, %v426
  %v428 = vpop.f32.mrb[0].mxu0
  %429 = vmatprep.mubr.f32.mxu0 0.0
  %430 = vmatmul.mubr.f32.gmra.mrb[0].mxu0 %v140
  %v431 = vpop.f32.mrb[0].mxu0
  %v432 = vadd.f32 0.0, %v431
  %v433 = vpop.f32.mrb[0].mxu0
  %434 = vmatprep.mubr.f32.mxu0 0.0
  %435 = vmatmul.mubr.f32.gmra.mrb[0].mxu0 %v143
  %v436 = vpop.f32.mrb[0].mxu0
  %v437 = vadd.f32 0.0, %v436
  %v438 = vpop.f32.mrb[0].mxu0
  %439 = vmatprep.mubr.f32.mxu0 0.0
  %440 = vmatmul.mubr.f32.gmra.mrb[0].mxu0 %v146
  %v441 = vpop.f32.mrb[0].mxu0
  %v442 = vadd.f32 0.0, %v441
  %v443 = vpop.f32.mrb[0].mxu0
  %444 = vmatprep.mubr.f32.mxu0 0.0
  %445 = vmatmul.mubr.f32.gmra.mrb[0].mxu0 %v149
  %v446 = vpop.f32.mrb[0].mxu0
  %v447 = vadd.f32 0.0, %v446
  %v448 = vpop.f32.mrb[0].mxu0
  %449 = vmatprep.mubr.f32.mxu0 0.0
  %450 = vmatmul.mubr.f32.gmra.mrb[0].mxu0 %v152
  %v451 = vpop.f32.mrb[0].mxu0
  %v452 = vadd.f32 0.0, %v451
  %v453 = vpop.f32.mrb[0].mxu0
  %454 = vmatprep.mubr.f32.mxu0 0.0
  %455 = vmatmul.mubr.f32.gmra.mrb[0].mxu0 %v155
  %v456 = vpop.f32.mrb[0].mxu0
  %v457 = vadd.f32 0.0, %v456
  %v458 = vpop.f32.mrb[0].mxu0
  %459 = vmatprep.mubr.f32.mxu0 0.0
  %460 = vmatmul.mubr.f32.gmra.mrb[0].mxu0 %v158
  %v461 = vpop.f32.mrb[0].mxu0
  %v462 = vadd.f32 0.0, %v461
  %v463 = vpop.f32.mrb[0].mxu0
  %464 = vmatprep.mubr.f32.mxu0 0.0
  %465 = vmatmul.mubr.f32.gmra.mrb[0].mxu0 %v161
  %v466 = vpop.f32.mrb[0].mxu0
  %v467 = vadd.f32 0.0, %v466
  %v468 = vpop.f32.mrb[0].mxu0
  %469 = vmatprep.mubr.f32.mxu0 0.0
  %470 = vmatmul.mubr.f32.gmra.mrb[0].mxu0 %v164
  %v471 = vpop.f32.mrb[0].mxu0
  %v472 = vadd.f32 0.0, %v471
  %v473 = vpop.f32.mrb[0].mxu0
  %474 = vmatprep.mubr.f32.mxu0 0.0
  %475 = vmatmul.mubr.f32.gmra.mrb[0].mxu0 %v167
  %v476 = vpop.f32.mrb[0].mxu0
  %v477 = vadd.f32 0.0, %v476
  %v478 = vpop.f32.mrb[0].mxu0
  %479 = vmatprep.mubr.f32.mxu0 0.0
  %480 = vmatmul.mubr.f32.gmra.mrb[0].mxu0 %v170
  %v481 = vpop.f32.mrb[0].mxu0
  %v482 = vadd.f32 0.0, %v481
  %v483 = vpop.f32.mrb[0].mxu0
  %484 = vmatprep.mubr.f32.mxu0 0.0
  %485 = vmatmul.mubr.f32.gmra.mrb[0].mxu0 %v173
  %v486 = vpop.f32.mrb[0].mxu0
  %v487 = vadd.f32 0.0, %v486
  %v488 = vpop.f32.mrb[0].mxu0
  %489 = vmatprep.mubr.f32.mxu0 0.0
  %490 = vmatmul.mubr.f32.gmra.mrb[0].mxu0 %v176
  %v491 = vpop.f32.mrb[0].mxu0
  %v492 = vadd.f32 0.0, %v491
  %v493 = vpop.f32.mrb[0].mxu0
  %494 = vmatprep.mubr.f32.mxu0 0.0
  %495 = vmatmul.mubr.f32.gmra.mrb[0].mxu0 %v179
  %v496 = vpop.f32.mrb[0].mxu0
  %v497 = vadd.f32 0.0, %v496
  %v498 = vpop.f32.mrb[0].mxu0
  %499 = vmatprep.mubr.f32.mxu0 0.0
  %500 = vmatmul.mubr.f32.gmra.mrb[0].mxu0 %v182
  %v501 = vpop.f32.mrb[0].mxu0
  %v502 = vadd.f32 0.0, %v501
  %v503 = vpop.f32.mrb[0].mxu0
  %504 = vmatprep.mubr.f32.mxu0 0.0
  %505 = vmatmul.mubr.f32.gmra.mrb[0].mxu0 %v185
  %v506 = vpop.f32.mrb[0].mxu0
  %v507 = vadd.f32 0.0, %v506
  %v508 = vpop.f32.mrb[0].mxu0
  %509 = vmatprep.mubr.f32.mxu0 0.0
  %510 = vmatmul.mubr.f32.gmra.mrb[0].mxu0 %v188
  %v511 = vpop.f32.mrb[0].mxu0
  %v512 = vadd.f32 0.0, %v511
  %v513 = vpop.f32.mrb[0].mxu0
  %514 = vmatprep.mubr.f32.mxu0 0.0
  %515 = vmatmul.mubr.f32.gmra.mrb[0].mxu0 %v191
  %v516 = vpop.f32.mrb[0].mxu0
  %v517 = vadd.f32 0.0, %v516
  %v518 = vpop.f32.mrb[0].mxu0
  %519 = vmatprep.mubr.f32.mxu0 0.0
  %520 = vmatmul.mubr.f32.gmra.mrb[0].mxu0 %v194
  %v521 = vpop.f32.mrb[0].mxu0
  %v522 = vadd.f32 0.0, %v521
  %v523 = vpop.f32.mrb[0].mxu0
  %524 = vmatprep.mubr.f32.mxu0 0.0
  %525 = vmatmul.mubr.f32.gmra.mrb[0].mxu0 %v197
  %v526 = vpop.f32.mrb[0].mxu0
  %v527 = vadd.f32 0.0, %v526
  %v528 = vpop.f32.mrb[0].mxu0
  %529 = vmatprep.mubr.f32.mxu0 0.0
  %530 = vmatmul.mubr.f32.gmra.mrb[0].mxu0 %v200
  %v531 = vpop.f32.mrb[0].mxu0
  %v532 = vadd.f32 0.0, %v531
  %v533 = vpop.f32.mrb[0].mxu0
  %534 = vmatprep.mubr.f32.mxu0 0.0
  %535 = vmatmul.mubr.f32.gmra.mrb[0].mxu0 %v203
  %v536 = vpop.f32.mrb[0].mxu0
  %v537 = vadd.f32 0.0, %v536
  %v538 = vpop.f32.mrb[0].mxu0
  %539 = vmatprep.mubr.f32.mxu0 0.0
  %540 = vmatmul.mubr.f32.gmra.mrb[0].mxu0 %v206
  %v541 = vpop.f32.mrb[0].mxu0
  %v542 = vadd.f32 0.0, %v541
  %v543 = vpop.f32.mrb[0].mxu0
  %544 = vmatprep.mubr.f32.mxu0 0.0
  %545 = vmatmul.mubr.f32.gmra.mrb[0].mxu0 %v209
  %v546 = vpop.f32.mrb[0].mxu0
  %v547 = vadd.f32 0.0, %v546
  %v548 = vpop.f32.mrb[0].mxu0
  %549 = vmatprep.mubr.f32.mxu0 0.0
  %550 = vmatmul.mubr.f32.gmra.mrb[0].mxu0 %v212
  %v551 = vpop.f32.mrb[0].mxu0
  %v552 = vadd.f32 0.0, %v551
  %v553 = vpop.f32.mrb[0].mxu0
  %554 = vmatprep.mubr.f32.mxu0 0.0
  %555 = vmatmul.mubr.f32.gmra.mrb[0].mxu0 %v215
  %v556 = vpop.f32.mrb[0].mxu0
  %v557 = vadd.f32 0.0, %v556
  %v558 = vpop.f32.mrb[0].mxu0
  %559 = vmatprep.mubr.f32.mxu0 0.0
  %560 = vmatmul.mubr.f32.gmra.mrb[0].mxu0 %v218
  %v561 = vpop.f32.mrb[0].mxu0
  %v562 = vadd.f32 0.0, %v561
  %v563 = vpop.f32.mrb[0].mxu0
  %564 = vmatprep.mubr.f32.mxu0 0.0
  %565 = vmatmul.mubr.f32.gmra.mrb[0].mxu0 %v221
  %v566 = vpop.f32.mrb[0].mxu0
  %v567 = vadd.f32 0.0, %v566
  %v568 = vpop.f32.mrb[0].mxu0
  %569 = vmatprep.mubr.f32.mxu0 0.0
  %570 = vmatmul.mubr.f32.gmra.mrb[0].mxu0 %v224
  %v571 = vpop.f32.mrb[0].mxu0
  %v572 = vadd.f32 0.0, %v571
  %v573 = vpop.f32.mrb[0].mxu0
  %574 = vmatprep.mubr.f32.mxu0 0.0
  %575 = vmatmul.mubr.f32.gmra.mrb[0].mxu0 %v227
  %v576 = vpop.f32.mrb[0].mxu0
  %v577 = vadd.f32 0.0, %v576
  %v578 = vpop.f32.mrb[0].mxu0
  %579 = vmatprep.mubr.f32.mxu0 0.0
  %580 = vmatmul.mubr.f32.gmra.mrb[0].mxu0 %v230
  %v581 = vpop.f32.mrb[0].mxu0
  %v582 = vadd.f32 0.0, %v581
  %v583 = vpop.f32.mrb[0].mxu0
  %584 = vmatprep.mubr.f32.mxu0 0.0
  %585 = vmatmul.mubr.f32.gmra.mrb[0].mxu0 %v233
  %v586 = vpop.f32.mrb[0].mxu0
  %v587 = vadd.f32 0.0, %v586
  %v588 = vpop.f32.mrb[0].mxu0
  %589 = vmatprep.mubr.f32.mxu0 0.0
  %590 = vmatmul.mubr.f32.gmra.mrb[0].mxu0 %v236
  %v591 = vpop.f32.mrb[0].mxu0
  %v592 = vadd.f32 0.0, %v591
  %v593 = vpop.f32.mrb[0].mxu0
  %594 = vmatprep.mubr.f32.mxu0 0.0
  %595 = vmatmul.mubr.f32.gmra.mrb[0].mxu0 %v239
  %v596 = vpop.f32.mrb[0].mxu0
  %v597 = vadd.f32 0.0, %v596
  %v598 = vpop.f32.mrb[0].mxu0
  %599 = vmatprep.mubr.f32.mxu0 0.0
  %600 = vmatmul.mubr.f32.gmra.mrb[0].mxu0 %v242
  %v601 = vpop.f32.mrb[0].mxu0
  %v602 = vadd.f32 0.0, %v601
  %v603 = vpop.f32.mrb[0].mxu0
  %604 = vmatprep.mubr.f32.mxu0 0.0
  %605 = vmatmul.mubr.f32.gmra.mrb[0].mxu0 %v245
  %v606 = vpop.f32.mrb[0].mxu0
  %v607 = vadd.f32 0.0, %v606
  %v608 = vpop.f32.mrb[0].mxu0
  %609 = vmatprep.mubr.f32.mxu0 0.0
  %610 = vmatmul.mubr.f32.gmra.mrb[0].mxu0 %v248
  %v611 = vpop.f32.mrb[0].mxu0
  %v612 = vadd.f32 0.0, %v611
  %v613 = vpop.f32.mrb[0].mxu0
  %614 = vmatprep.mubr.f32.mxu0 0.0
  %615 = vmatmul.mubr.f32.gmra.mrb[0].mxu0 %v251
  %v616 = vpop.f32.mrb[0].mxu0
  %v617 = vadd.f32 0.0, %v616
  %v618 = vpop.f32.mrb[0].mxu0
  %619 = vmatprep.mubr.f32.mxu0 0.0
  %620 = vmatmul.mubr.f32.gmra.mrb[0].mxu0 %v254
  %v621 = vpop.f32.mrb[0].mxu0
  %v622 = vadd.f32 0.0, %v621
  %v623 = vpop.f32.mrb[0].mxu0
  %624 = vmatprep.mubr.f32.mxu0 0.0
  %625 = vmatmul.mubr.f32.gmra.mrb[0].mxu0 %v257
  %v626 = vpop.f32.mrb[0].mxu0
  %v627 = vadd.f32 0.0, %v626
  %v628 = vpop.f32.mrb[0].mxu0
  %629 = vmatprep.mubr.f32.mxu0 0.0
  %630 = vmatmul.mubr.f32.gmra.mrb[0].mxu0 %v260
  %v631 = vpop.f32.mrb[0].mxu0
  %v632 = vadd.f32 0.0, %v631
  %v633 = vpop.f32.mrb[0].mxu0
  %634 = vmatprep.mubr.f32.mxu0 0.0
  %635 = vmatmul.mubr.f32.gmra.mrb[0].mxu0 %v263
  %v636 = vpop.f32.mrb[0].mxu0
  %v637 = vadd.f32 0.0, %v636
  %v638 = vpop.f32.mrb[0].mxu0
  %639 = vmatprep.mubr.f32.mxu0 0.0
  %640 = vmatmul.mubr.f32.gmra.mrb[0].mxu0 %v266
  %v641 = vpop.f32.mrb[0].mxu0
  %v642 = vadd.f32 0.0, %v641
  %v643 = vpop.f32.mrb[0].mxu0
  %644 = vmatprep.mubr.f32.mxu0 0.0
  %645 = vmatmul.mubr.f32.gmra.mrb[0].mxu0 %v269
  %v646 = vpop.f32.mrb[0].mxu0
  %v647 = vadd.f32 0.0, %v646
  %v648 = vpop.f32.mrb[0].mxu0
  %649 = vmatprep.mubr.f32.mxu0 0.0
  %650 = vmatmul.mubr.f32.gmra.mrb[0].mxu0 %v272
  %v651 = vpop.f32.mrb[0].mxu0
  %v652 = vadd.f32 0.0, %v651
  %v653 = vpop.f32.mrb[0].mxu0
  %654 = vmatprep.mubr.f32.mxu0 0.0
  %655 = vmatmul.mubr.f32.gmra.mrb[0].mxu0 %v275
  %v656 = vpop.f32.mrb[0].mxu0
  %v657 = vadd.f32 0.0, %v656
  %v658 = vpop.f32.mrb[0].mxu0
  %659 = vmatprep.mubr.f32.mxu0 0.0
  %660 = vmatmul.mubr.f32.gmra.mrb[0].mxu0 %v278
  %v661 = vpop.f32.mrb[0].mxu0
  %v662 = vadd.f32 0.0, %v661
  %v663 = vpop.f32.mrb[0].mxu0
  %664 = vdwg.mxu0
  %vm665 = vcmask 523264
  %666 = vst.msk [vmem:[%s2] sm:$0xff] %vm665, %v347
  %667 = vst.msk [vmem:[%s2 + $0x8] sm:$0xff] %vm665, %v352
  %668 = vst.msk [vmem:[%s2 + $0x10] sm:$0xff] %vm665, %v357
  %669 = vst.msk [vmem:[%s2 + $0x18] sm:$0xff] %vm665, %v362
  %670 = vst.msk [vmem:[%s2 + $0x20] sm:$0xff] %vm665, %v367
  %671 = vst.msk [vmem:[%s2 + $0x28] sm:$0xff] %vm665, %v372
  %672 = vst.msk [vmem:[%s2 + $0x30] sm:$0xff] %vm665, %v377
  %673 = vst.msk [vmem:[%s2 + $0x38] sm:$0xff] %vm665, %v382
  %674 = vst.msk [vmem:[%s2 + $0x40] sm:$0xff] %vm665, %v387
  %675 = vst.msk [vmem:[%s2 + $0x48] sm:$0xff] %vm665, %v392
  %676 = vst.msk [vmem:[%s2 + $0x50] sm:$0xff] %vm665, %v397
  %677 = vst.msk [vmem:[%s2 + $0x58] sm:$0xff] %vm665, %v402
  %678 = vst.msk [vmem:[%s2 + $0x60] sm:$0xff] %vm665, %v407
  %679 = vst.msk [vmem:[%s2 + $0x68] sm:$0xff] %vm665, %v412
  %680 = vst.msk [vmem:[%s2 + $0x70] sm:$0xff] %vm665, %v417
  %681 = vst.msk [vmem:[%s2 + $0x78] sm:$0xff] %vm665, %v422
  %682 = vst.msk [vmem:[%s2 + $0x80] sm:$0xff] %vm665, %v427
  %683 = vst.msk [vmem:[%s2 + $0x88] sm:$0xff] %vm665, %v432
  %684 = vst.msk [vmem:[%s2 + $0x90] sm:$0xff] %vm665, %v437
  %685 = vst.msk [vmem:[%s2 + $0x98] sm:$0xff] %vm665, %v442
  %686 = vst.msk [vmem:[%s2 + $0xa0] sm:$0xff] %vm665, %v447
  %687 = vst.msk [vmem:[%s2 + $0xa8] sm:$0xff] %vm665, %v452
  %688 = vst.msk [vmem:[%s2 + $0xb0] sm:$0xff] %vm665, %v457
  %689 = vst.msk [vmem:[%s2 + $0xb8] sm:$0xff] %vm665, %v462
  %690 = vst.msk [vmem:[%s2 + $0xc0] sm:$0xff] %vm665, %v467
  %691 = vst.msk [vmem:[%s2 + $0xc8] sm:$0xff] %vm665, %v472
  %692 = vst.msk [vmem:[%s2 + $0xd0] sm:$0xff] %vm665, %v477
  %693 = vst.msk [vmem:[%s2 + $0xd8] sm:$0xff] %vm665, %v482
  %694 = vst.msk [vmem:[%s2 + $0xe0] sm:$0xff] %vm665, %v487
  %695 = vst.msk [vmem:[%s2 + $0xe8] sm:$0xff] %vm665, %v492
  %696 = vst.msk [vmem:[%s2 + $0xf0] sm:$0xff] %vm665, %v497
  %697 = vst.msk [vmem:[%s2 + $0xf8] sm:$0xff] %vm665, %v502
  %698 = vst.msk [vmem:[%s2 + $0x100] sm:$0xff] %vm665, %v507
  %699 = vst.msk [vmem:[%s2 + $0x108] sm:$0xff] %vm665, %v512
  %700 = vst.msk [vmem:[%s2 + $0x110] sm:$0xff] %vm665, %v517
  %701 = vst.msk [vmem:[%s2 + $0x118] sm:$0xff] %vm665, %v522
  %702 = vst.msk [vmem:[%s2 + $0x120] sm:$0xff] %vm665, %v527
  %703 = vst.msk [vmem:[%s2 + $0x128] sm:$0xff] %vm665, %v532
  %704 = vst.msk [vmem:[%s2 + $0x130] sm:$0xff] %vm665, %v537
  %705 = vst.msk [vmem:[%s2 + $0x138] sm:$0xff] %vm665, %v542
  %706 = vst.msk [vmem:[%s2 + $0x140] sm:$0xff] %vm665, %v547
  %707 = vst.msk [vmem:[%s2 + $0x148] sm:$0xff] %vm665, %v552
  %708 = vst.msk [vmem:[%s2 + $0x150] sm:$0xff] %vm665, %v557
  %709 = vst.msk [vmem:[%s2 + $0x158] sm:$0xff] %vm665, %v562
  %710 = vst.msk [vmem:[%s2 + $0x160] sm:$0xff] %vm665, %v567
  %711 = vst.msk [vmem:[%s2 + $0x168] sm:$0xff] %vm665, %v572
  %712 = vst.msk [vmem:[%s2 + $0x170] sm:$0xff] %vm665, %v577
  %713 = vst.msk [vmem:[%s2 + $0x178] sm:$0xff] %vm665, %v582
  %714 = vst.msk [vmem:[%s2 + $0x180] sm:$0xff] %vm665, %v587
  %715 = vst.msk [vmem:[%s2 + $0x188] sm:$0xff] %vm665, %v592
  %716 = vst.msk [vmem:[%s2 + $0x190] sm:$0xff] %vm665, %v597
  %717 = vst.msk [vmem:[%s2 + $0x198] sm:$0xff] %vm665, %v602
  %718 = vst.msk [vmem:[%s2 + $0x1a0] sm:$0xff] %vm665, %v607
  %719 = vst.msk [vmem:[%s2 + $0x1a8] sm:$0xff] %vm665, %v612
  %720 = vst.msk [vmem:[%s2 + $0x1b0] sm:$0xff] %vm665, %v617
  %721 = vst.msk [vmem:[%s2 + $0x1b8] sm:$0xff] %vm665, %v622
  %722 = vst.msk [vmem:[%s2 + $0x1c0] sm:$0xff] %vm665, %v627
  %723 = vst.msk [vmem:[%s2 + $0x1c8] sm:$0xff] %vm665, %v632
  %724 = vst.msk [vmem:[%s2 + $0x1d0] sm:$0xff] %vm665, %v637
  %725 = vst.msk [vmem:[%s2 + $0x1d8] sm:$0xff] %vm665, %v642
  %726 = vst.msk [vmem:[%s2 + $0x1e0] sm:$0xff] %vm665, %v647
  %727 = vst.msk [vmem:[%s2 + $0x1e8] sm:$0xff] %vm665, %v652
  %728 = vst.msk [vmem:[%s2 + $0x1f0] sm:$0xff] %vm665, %v657
  %729 = vst.msk [vmem:[%s2 + $0x1f8] sm:$0xff] %vm665, %v662
  %v730 = vsel %vm665, %v347, 0.0
  %v731 = vsel %vm665, %v352, 0.0
  %v732 = vadd.f32 %v730, %v731
  %v733 = vsel %vm665, %v357, 0.0
  %v734 = vadd.f32 %v732, %v733
  %v735 = vsel %vm665, %v362, 0.0
  %v736 = vadd.f32 %v734, %v735
  %v737 = vsel %vm665, %v367, 0.0
  %v738 = vadd.f32 %v736, %v737
  %v739 = vsel %vm665, %v372, 0.0
  %v740 = vadd.f32 %v738, %v739
  %v741 = vsel %vm665, %v377, 0.0
  %v742 = vadd.f32 %v740, %v741
  %v743 = vsel %vm665, %v382, 0.0
  %v744 = vadd.f32 %v742, %v743
  %v745 = vsel %vm665, %v387, 0.0
  %v746 = vadd.f32 %v744, %v745
  %v747 = vsel %vm665, %v392, 0.0
  %v748 = vadd.f32 %v746, %v747
  %v749 = vsel %vm665, %v397, 0.0
  %v750 = vadd.f32 %v748, %v749
  %v751 = vsel %vm665, %v402, 0.0
  %v752 = vadd.f32 %v750, %v751
  %v753 = vsel %vm665, %v407, 0.0
  %v754 = vadd.f32 %v752, %v753
  %v755 = vsel %vm665, %v412, 0.0
  %v756 = vadd.f32 %v754, %v755
  %v757 = vsel %vm665, %v417, 0.0
  %v758 = vadd.f32 %v756, %v757
  %v759 = vsel %vm665, %v422, 0.0
  %v760 = vadd.f32 %v758, %v759
  %v761 = vsel %vm665, %v427, 0.0
  %v762 = vadd.f32 %v760, %v761
  %v763 = vsel %vm665, %v432, 0.0
  %v764 = vadd.f32 %v762, %v763
  %v765 = vsel %vm665, %v437, 0.0
  %v766 = vadd.f32 %v764, %v765
  %v767 = vsel %vm665, %v442, 0.0
  %v768 = vadd.f32 %v766, %v767
  %v769 = vsel %vm665, %v447, 0.0
  %v770 = vadd.f32 %v768, %v769
  %v771 = vsel %vm665, %v452, 0.0
  %v772 = vadd.f32 %v770, %v771
  %v773 = vsel %vm665, %v457, 0.0
  %v774 = vadd.f32 %v772, %v773
  %v775 = vsel %vm665, %v462, 0.0
  %v776 = vadd.f32 %v774, %v775
  %v777 = vsel %vm665, %v467, 0.0
  %v778 = vadd.f32 %v776, %v777
  %v779 = vsel %vm665, %v472, 0.0
  %v780 = vadd.f32 %v778, %v779
  %v781 = vsel %vm665, %v477, 0.0
  %v782 = vadd.f32 %v780, %v781
  %v783 = vsel %vm665, %v482, 0.0
  %v784 = vadd.f32 %v782, %v783
  %v785 = vsel %vm665, %v487, 0.0
  %v786 = vadd.f32 %v784, %v785
  %v787 = vsel %vm665, %v492, 0.0
  %v788 = vadd.f32 %v786, %v787
  %v789 = vsel %vm665, %v497, 0.0
  %v790 = vadd.f32 %v788, %v789
  %v791 = vsel %vm665, %v502, 0.0
  %v792 = vadd.f32 %v790, %v791
  %v793 = vsel %vm665, %v507, 0.0
  %v794 = vadd.f32 %v792, %v793
  %v795 = vsel %vm665, %v512, 0.0
  %v796 = vadd.f32 %v794, %v795
  %v797 = vsel %vm665, %v517, 0.0
  %v798 = vadd.f32 %v796, %v797
  %v799 = vsel %vm665, %v522, 0.0
  %v800 = vadd.f32 %v798, %v799
  %v801 = vsel %vm665, %v527, 0.0
  %v802 = vadd.f32 %v800, %v801
  %v803 = vsel %vm665, %v532, 0.0
  %v804 = vadd.f32 %v802, %v803
  %v805 = vsel %vm665, %v537, 0.0
  %v806 = vadd.f32 %v804, %v805
  %v807 = vsel %vm665, %v542, 0.0
  %v808 = vadd.f32 %v806, %v807
  %v809 = vsel %vm665, %v547, 0.0
  %v810 = vadd.f32 %v808, %v809
  %v811 = vsel %vm665, %v552, 0.0
  %v812 = vadd.f32 %v810, %v811
  %v813 = vsel %vm665, %v557, 0.0
  %v814 = vadd.f32 %v812, %v813
  %v815 = vsel %vm665, %v562, 0.0
  %v816 = vadd.f32 %v814, %v815
  %v817 = vsel %vm665, %v567, 0.0
  %v818 = vadd.f32 %v816, %v817
  %v819 = vsel %vm665, %v572, 0.0
  %v820 = vadd.f32 %v818, %v819
  %v821 = vsel %vm665, %v577, 0.0
  %v822 = vadd.f32 %v820, %v821
  %v823 = vsel %vm665, %v582, 0.0
  %v824 = vadd.f32 %v822, %v823
  %v825 = vsel %vm665, %v587, 0.0
  %v826 = vadd.f32 %v824, %v825
  %v827 = vsel %vm665, %v592, 0.0
  %v828 = vadd.f32 %v826, %v827
  %v829 = vsel %vm665, %v597, 0.0
  %v830 = vadd.f32 %v828, %v829
  %v831 = vsel %vm665, %v602, 0.0
  %v832 = vadd.f32 %v830, %v831
  %v833 = vsel %vm665, %v607, 0.0
  %v834 = vadd.f32 %v832, %v833
  %v835 = vsel %vm665, %v612, 0.0
  %v836 = vadd.f32 %v834, %v835
  %v837 = vsel %vm665, %v617, 0.0
  %v838 = vadd.f32 %v836, %v837
  %v839 = vsel %vm665, %v622, 0.0
  %v840 = vadd.f32 %v838, %v839
  %v841 = vsel %vm665, %v627, 0.0
  %v842 = vadd.f32 %v840, %v841
  %v843 = vsel %vm665, %v632, 0.0
  %v844 = vadd.f32 %v842, %v843
  %v845 = vsel %vm665, %v637, 0.0
  %v846 = vadd.f32 %v844, %v845
  %v847 = vsel %vm665, %v642, 0.0
  %v848 = vadd.f32 %v846, %v847
  %v849 = vsel %vm665, %v647, 0.0
  %v850 = vadd.f32 %v848, %v849
  %v851 = vsel %vm665, %v652, 0.0
  %v852 = vadd.f32 %v850, %v851
  %v853 = vsel %vm665, %v657, 0.0
  %v854 = vadd.f32 %v852, %v853
  %v855 = vsel %vm665, %v662, 0.0
  %v856 = vadd.f32 %v854, %v855
  %v857 = vrot.slane %v856, 4
  %v858 = vadd.f32 %v856, %v857
  %v859 = vrot.slane %v858, 2
  %v860 = vadd.f32 %v858, %v859
  %v861 = vrot.slane %v860, 1
  %v862 = vadd.f32 %v860, %v861
  %v863 = vmul.f32 %v347, %v347
  %v864 = vmul.f32 %v352, %v352
  %v865 = vmul.f32 %v357, %v357
  %v866 = vmul.f32 %v362, %v362
  %v867 = vmul.f32 %v367, %v367
  %v868 = vmul.f32 %v372, %v372
  %v869 = vmul.f32 %v377, %v377
  %v870 = vmul.f32 %v382, %v382
  %v871 = vmul.f32 %v387, %v387
  %v872 = vmul.f32 %v392, %v392
  %v873 = vmul.f32 %v397, %v397
  %v874 = vmul.f32 %v402, %v402
  %v875 = vmul.f32 %v407, %v407
  %v876 = vmul.f32 %v412, %v412
  %v877 = vmul.f32 %v417, %v417
  %v878 = vmul.f32 %v422, %v422
  %v879 = vmul.f32 %v427, %v427
  %v880 = vmul.f32 %v432, %v432
  %v881 = vmul.f32 %v437, %v437
  %v882 = vmul.f32 %v442, %v442
  %v883 = vmul.f32 %v447, %v447
  %v884 = vmul.f32 %v452, %v452
  %v885 = vmul.f32 %v457, %v457
  %v886 = vmul.f32 %v462, %v462
  %v887 = vmul.f32 %v467, %v467
  %v888 = vmul.f32 %v472, %v472
  %v889 = vmul.f32 %v477, %v477
  %v890 = vmul.f32 %v482, %v482
  %v891 = vmul.f32 %v487, %v487
  %v892 = vmul.f32 %v492, %v492
  %v893 = vmul.f32 %v497, %v497
  %v894 = vmul.f32 %v502, %v502
  %v895 = vmul.f32 %v507, %v507
  %v896 = vmul.f32 %v512, %v512
  %v897 = vmul.f32 %v517, %v517
  %v898 = vmul.f32 %v522, %v522
  %v899 = vmul.f32 %v527, %v527
  %v900 = vmul.f32 %v532, %v532
  %v901 = vmul.f32 %v537, %v537
  %v902 = vmul.f32 %v542, %v542
  %v903 = vmul.f32 %v547, %v547
  %v904 = vmul.f32 %v552, %v552
  %v905 = vmul.f32 %v557, %v557
  %v906 = vmul.f32 %v562, %v562
  %v907 = vmul.f32 %v567, %v567
  %v908 = vmul.f32 %v572, %v572
  %v909 = vmul.f32 %v577, %v577
  %v910 = vmul.f32 %v582, %v582
  %v911 = vmul.f32 %v587, %v587
  %v912 = vmul.f32 %v592, %v592
  %v913 = vmul.f32 %v597, %v597
  %v914 = vmul.f32 %v602, %v602
  %v915 = vmul.f32 %v607, %v607
  %v916 = vmul.f32 %v612, %v612
  %v917 = vmul.f32 %v617, %v617
  %v918 = vmul.f32 %v622, %v622
  %v919 = vmul.f32 %v627, %v627
  %v920 = vmul.f32 %v632, %v632
  %v921 = vmul.f32 %v637, %v637
  %v922 = vmul.f32 %v642, %v642
  %v923 = vmul.f32 %v647, %v647
  %v924 = vmul.f32 %v652, %v652
  %v925 = vmul.f32 %v657, %v657
  %v926 = vmul.f32 %v662, %v662
  %v927 = vsel %vm665, %v863, 0.0
  %v928 = vsel %vm665, %v864, 0.0
  %v929 = vadd.f32 %v927, %v928
  %v930 = vsel %vm665, %v865, 0.0
  %v931 = vadd.f32 %v929, %v930
  %v932 = vsel %vm665, %v866, 0.0
  %v933 = vadd.f32 %v931, %v932
  %v934 = vsel %vm665, %v867, 0.0
  %v935 = vadd.f32 %v933, %v934
  %v936 = vsel %vm665, %v868, 0.0
  %v937 = vadd.f32 %v935, %v936
  %v938 = vsel %vm665, %v869, 0.0
  %v939 = vadd.f32 %v937, %v938
  %v940 = vsel %vm665, %v870, 0.0
  %v941 = vadd.f32 %v939, %v940
  %v942 = vsel %vm665, %v871, 0.0
  %v943 = vadd.f32 %v941, %v942
  %v944 = vsel %vm665, %v872, 0.0
  %v945 = vadd.f32 %v943, %v944
  %v946 = vsel %vm665, %v873, 0.0
  %v947 = vadd.f32 %v945, %v946
  %v948 = vsel %vm665, %v874, 0.0
  %v949 = vadd.f32 %v947, %v948
  %v950 = vsel %vm665, %v875, 0.0
  %v951 = vadd.f32 %v949, %v950
  %v952 = vsel %vm665, %v876, 0.0
  %v953 = vadd.f32 %v951, %v952
  %v954 = vsel %vm665, %v877, 0.0
  %v955 = vadd.f32 %v953, %v954
  %v956 = vsel %vm665, %v878, 0.0
  %v957 = vadd.f32 %v955, %v956
  %v958 = vsel %vm665, %v879, 0.0
  %v959 = vadd.f32 %v957, %v958
  %v960 = vsel %vm665, %v880, 0.0
  %v961 = vadd.f32 %v959, %v960
  %v962 = vsel %vm665, %v881, 0.0
  %v963 = vadd.f32 %v961, %v962
  %v964 = vsel %vm665, %v882, 0.0
  %v965 = vadd.f32 %v963, %v964
  %v966 = vsel %vm665, %v883, 0.0
  %v967 = vadd.f32 %v965, %v966
  %v968 = vsel %vm665, %v884, 0.0
  %v969 = vadd.f32 %v967, %v968
  %v970 = vsel %vm665, %v885, 0.0
  %v971 = vadd.f32 %v969, %v970
  %v972 = vsel %vm665, %v886, 0.0
  %v973 = vadd.f32 %v971, %v972
  %v974 = vsel %vm665, %v887, 0.0
  %v975 = vadd.f32 %v973, %v974
  %v976 = vsel %vm665, %v888, 0.0
  %v977 = vadd.f32 %v975, %v976
  %v978 = vsel %vm665, %v889, 0.0
  %v979 = vadd.f32 %v977, %v978
  %v980 = vsel %vm665, %v890, 0.0
  %v981 = vadd.f32 %v979, %v980
  %v982 = vsel %vm665, %v891, 0.0
  %v983 = vadd.f32 %v981, %v982
  %v984 = vsel %vm665, %v892, 0.0
  %v985 = vadd.f32 %v983, %v984
  %v986 = vsel %vm665, %v893, 0.0
  %v987 = vadd.f32 %v985, %v986
  %v988 = vsel %vm665, %v894, 0.0
  %v989 = vadd.f32 %v987, %v988
  %v990 = vsel %vm665, %v895, 0.0
  %v991 = vadd.f32 %v989, %v990
  %v992 = vsel %vm665, %v896, 0.0
  %v993 = vadd.f32 %v991, %v992
  %v994 = vsel %vm665, %v897, 0.0
  %v995 = vadd.f32 %v993, %v994
  %v996 = vsel %vm665, %v898, 0.0
  %v997 = vadd.f32 %v995, %v996
  %v998 = vsel %vm665, %v899, 0.0
  %v999 = vadd.f32 %v997, %v998
  %v1000 = vsel %vm665, %v900, 0.0
  %v1001 = vadd.f32 %v999, %v1000
  %v1002 = vsel %vm665, %v901, 0.0
  %v1003 = vadd.f32 %v1001, %v1002
  %v1004 = vsel %vm665, %v902, 0.0
  %v1005 = vadd.f32 %v1003, %v1004
  %v1006 = vsel %vm665, %v903, 0.0
  %v1007 = vadd.f32 %v1005, %v1006
  %v1008 = vsel %vm665, %v904, 0.0
  %v1009 = vadd.f32 %v1007, %v1008
  %v1010 = vsel %vm665, %v905, 0.0
  %v1011 = vadd.f32 %v1009, %v1010
  %v1012 = vsel %vm665, %v906, 0.0
  %v1013 = vadd.f32 %v1011, %v1012
  %v1014 = vsel %vm665, %v907, 0.0
  %v1015 = vadd.f32 %v1013, %v1014
  %v1016 = vsel %vm665, %v908, 0.0
  %v1017 = vadd.f32 %v1015, %v1016
  %v1018 = vsel %vm665, %v909, 0.0
  %v1019 = vadd.f32 %v1017, %v1018
  %v1020 = vsel %vm665, %v910, 0.0
  %v1021 = vadd.f32 %v1019, %v1020
  %v1022 = vsel %vm665, %v911, 0.0
  %v1023 = vadd.f32 %v1021, %v1022
  %v1024 = vsel %vm665, %v912, 0.0
  %v1025 = vadd.f32 %v1023, %v1024
  %v1026 = vsel %vm665, %v913, 0.0
  %v1027 = vadd.f32 %v1025, %v1026
  %v1028 = vsel %vm665, %v914, 0.0
  %v1029 = vadd.f32 %v1027, %v1028
  %v1030 = vsel %vm665, %v915, 0.0
  %v1031 = vadd.f32 %v1029, %v1030
  %v1032 = vsel %vm665, %v916, 0.0
  %v1033 = vadd.f32 %v1031, %v1032
  %v1034 = vsel %vm665, %v917, 0.0
  %v1035 = vadd.f32 %v1033, %v1034
  %v1036 = vsel %vm665, %v918, 0.0
  %v1037 = vadd.f32 %v1035, %v1036
  %v1038 = vsel %vm665, %v919, 0.0
  %v1039 = vadd.f32 %v1037, %v1038
  %v1040 = vsel %vm665, %v920, 0.0
  %v1041 = vadd.f32 %v1039, %v1040
  %v1042 = vsel %vm665, %v921, 0.0
  %v1043 = vadd.f32 %v1041, %v1042
  %v1044 = vsel %vm665, %v922, 0.0
  %v1045 = vadd.f32 %v1043, %v1044
  %v1046 = vsel %vm665, %v923, 0.0
  %v1047 = vadd.f32 %v1045, %v1046
  %v1048 = vsel %vm665, %v924, 0.0
  %v1049 = vadd.f32 %v1047, %v1048
  %v1050 = vsel %vm665, %v925, 0.0
  %v1051 = vadd.f32 %v1049, %v1050
  %v1052 = vsel %vm665, %v926, 0.0
  %v1053 = vadd.f32 %v1051, %v1052
  %v1054 = vrot.slane %v1053, 4
  %v1055 = vadd.f32 %v1053, %v1054
  %v1056 = vrot.slane %v1055, 2
  %v1057 = vadd.f32 %v1055, %v1056
  %v1058 = vrot.slane %v1057, 1
  %v1059 = vadd.f32 %v1057, %v1058
  %1060 = vst.msk [vmem:[%s3] sm:$0xff] %vm665, %v862
  %1061 = vst.msk [vmem:[%s4] sm:$0xff] %vm665, %v1059
  // Predicated region
  $region10: #{deconv_block_forward.2} parent=0 // pred_check
    _
  $region11: #{deconv_block_forward.2} parent=0 // pred_check_branch
    %1063 = sbr.rel (0) target = $region13
  $region12: #{deconv_block_forward.2} parent=0 // pred_region
    _
  $region13: #{deconv_block_forward.2} parent=0 // pred_fallthru
    _
  // Predicated region
  $region14: #{deconv_block_forward.2} parent=0 // pred_check
    _
  $region15: #{deconv_block_forward.2} parent=0 // pred_check_branch
    %1065 = sbr.rel (0) target = $region17
  $region16: #{deconv_block_forward.2} parent=0 // pred_region
    _
  $region17: #{deconv_block_forward.2} parent=0 // pred_fallthru
    _
  // Predicated region
  $region18: #{deconv_block_forward.2} parent=0 // pred_check
    _
  $region19: #{deconv_block_forward.2} parent=0 // pred_check_branch
    %1067 = sbr.rel (0) target = $region21
  $region20: #{deconv_block_forward.2} parent=0 // pred_region
    _
  $region21: #{deconv_block_forward.2} parent=0 // pred_fallthru
    _
  // Predicated region
  $region22: #{deconv_block_forward.2} parent=0 // pred_check
    _
  $region23: #{deconv_block_forward.2} parent=0 // pred_check_branch
    %1069 = sbr.rel (0) target = $region25
  $region24: #{deconv_block_forward.2} parent=0 // pred_region
    _
  $region25: #{deconv_block_forward.2} parent=0 // pred_fallthru
    _
  // Predicated region
  $region26: #{deconv_block_forward.2} parent=0 // pred_check
    _
  $region27: #{deconv_block_forward.2} parent=0 // pred_check_branch
    %1071 = sbr.rel (0) target = $region29
  $region28: #{deconv_block_forward.2} parent=0 // pred_region
    _
  $region29: #{deconv_block_forward.2} parent=0 // pred_fallthru
    _
  // Predicated region
  $region30: #{deconv_block_forward.2} parent=0 // pred_check
    _
  $region31: #{deconv_block_forward.2} parent=0 // pred_check_branch
    %1073 = sbr.rel (0) target = $region33
  $region32: #{deconv_block_forward.2} parent=0 // pred_region
    _
  $region33: #{deconv_block_forward.2} parent=0 // pred_fallthru
    _

</llo_original>
